<compile_context>
chip_gen: v7x
topology: tpu7x:2x2x1
jax: 0.10.0
libtpu: 0.0.40
codegen_flags: <defaults>
</compile_context>

<pallas_src>
import functools
import math

import jax
import jax.numpy as jnp
from jax import lax
from jax.experimental import pallas as pl
from jax.experimental.pallas import tpu as pltpu

K = 7                      # spatial-gate conv kernel size
PAD = (K - 1) // 2         # = 3
VMEM_LIMIT = 32 * 1024 * 1024   # explicit scoped-VMEM limit (safe on v5e/v6e/v7x)
BLOCK_TARGET = 2 << 20          # ~2 MiB per input block -> double-buffered well under limit


def _largest_divisor_leq(n, cap):
    cap = max(1, min(n, cap))
    for d in range(cap, 0, -1):
        if n % d == 0:
            return d
    return 1


def _choose_channel_block(c, row_bytes, target):
    """Channel tile for the apply stage: full C if it fits, else the largest
    divisor of C that is a multiple of 8 (keeps the (8,128) block rule)."""
    if c * row_bytes <= target:
        return c
    cap = max(1, target // row_bytes)
    best = None
    for d in range(1, c + 1):
        if c % d == 0 and d <= cap and d % 8 == 0:
            best = d
    return best if best is not None else c


def gate_kernel(w_ref, p_ref, x_ref, gate_ref, mx_ref, sum_ref, *, inv_c):
    """Channel pool + 7x7 conv + folded BN + sigmoid for one batch element.

    Grid: (N, C // ca); axis 1 is a reduction over channel tiles.
    w_ref : SMEM f32[2*K*K]   conv weights, [in, kh, kw] row-major
                              (in-channel 0 multiplies the max map, 1 the mean map)
    p_ref : SMEM f32[2]       [bn_scale, bn_bias]  (eval-mode BatchNorm folded)
    x_ref : VMEM [1, ca, H, W]
    gate_ref : VMEM f32[1, H, W]
    mx_ref, sum_ref : VMEM f32[H, W]  running channel max / sum (scratch)
    """
    c_idx = pl.program_id(1)
    H = x_ref.shape[2]
    W = x_ref.shape[3]

    x = x_ref[0].astype(jnp.float32)                      # (ca, H, W)

    @pl.when(c_idx == 0)
    def _():
        mx_ref[...] = jnp.full((H, W), -jnp.inf, jnp.float32)
        sum_ref[...] = jnp.zeros((H, W), jnp.float32)

    mx_ref[...] = jnp.maximum(mx_ref[...], jnp.max(x, axis=0))
    sum_ref[...] = sum_ref[...] + jnp.sum(x, axis=0)

    @pl.when(c_idx == pl.num_programs(1) - 1)
    def _():
        mx = mx_ref[...]
        mn = sum_ref[...] * inv_c

        # Zero-pad only the pooled maps (2 * Hp * Wp elements) via concatenation;
        # this matches the conv's zero padding of the pooled input.
        def pad2d(m):
            zc = jnp.zeros((H, PAD), jnp.float32)
            m = jnp.concatenate([zc, m, zc], axis=1)       # (H, W + 2*PAD)
            zr = jnp.zeros((PAD, W + 2 * PAD), jnp.float32)
            return jnp.concatenate([zr, m, zr], axis=0)    # (Hp, Wp)

        mxp = pad2d(mx)
        mnp = pad2d(mn)

        # 7x7 conv (2 -> 1 channel) as 2*49 shifted MACs.  The lane (kw) shifts
        # are hoisted out of the kh loop (14 lane-offset slices instead of 98),
        # and two independent accumulators break the serial add chain.
        acc0 = jnp.zeros((H, W), jnp.float32)
        acc1 = jnp.zeros((H, W), jnp.float32)
        for kw in range(K):
            mx_kw = mxp[:, kw:kw + W]                      # (Hp, W) lane-aligned after this
            mn_kw = mnp[:, kw:kw + W]
            for kh in range(K):
                acc0 = acc0 + mx_kw[kh:kh + H, :] * w_ref[kh * K + kw]
                acc1 = acc1 + mn_kw[kh:kh + H, :] * w_ref[K * K + kh * K + kw]

        gate_ref[0] = jax.nn.sigmoid((acc0 + acc1) * p_ref[0] + p_ref[1])


def apply_kernel(x_ref, g_ref, o_ref):
    """out = relu(x * gate + x), lane-dense over the flattened spatial axis.

    x_ref : VMEM [nb, cb, H*W]
    g_ref : VMEM f32[nb, 1, H*W]   (broadcast over channels)
    o_ref : VMEM [nb, cb, H*W]
    """
    x = x_ref[...].astype(jnp.float32)
    g = g_ref[...]
    o_ref[...] = jnp.maximum(x * g + x, 0.0).astype(o_ref.dtype)


def cbam1_forward(x, conv_w, bn_gamma, bn_beta, bn_mean, bn_var, eps=1e-5):
    """x: (N, C, H, W).  conv_w: (1, 2, 7, 7).  BN params: shape (1,)."""
    # TODO(synk): BatchNorm is implemented in eval/inference mode (running stats);
    # PyTorch's default train() mode would use batch statistics instead.
    N, C, H, W = x.shape
    HW = H * W
    elem = x.dtype.itemsize

    w_flat = conv_w.reshape(2 * K * K).astype(jnp.float32)  # [in, kh, kw] row-major
    bn_scale = bn_gamma / jnp.sqrt(bn_var + eps)
    bn_bias = bn_beta - bn_mean * bn_scale
    p = jnp.stack([bn_scale[0], bn_bias[0]]).astype(jnp.float32)

    # ---------------- Stage A: spatial gate (N, H, W) ----------------
    ca = _largest_divisor_leq(C, max(1, BLOCK_TARGET // (H * W * elem)))
    gate = pl.pallas_call(
        functools.partial(gate_kernel, inv_c=1.0 / C),
        out_shape=jax.ShapeDtypeStruct((N, H, W), jnp.float32),
        grid=(N, C // ca),
        in_specs=[
            pl.BlockSpec(memory_space=pltpu.MemorySpace.SMEM),      # conv weights
            pl.BlockSpec(memory_space=pltpu.MemorySpace.SMEM),      # folded BN params
            pl.BlockSpec((1, ca, H, W), lambda n, c: (n, c, 0, 0)),  # x tile (unpadded)
        ],
        out_specs=pl.BlockSpec((1, H, W), lambda n, c: (n, 0, 0)),
        scratch_shapes=[pltpu.VMEM((H, W), jnp.float32),
                        pltpu.VMEM((H, W), jnp.float32)],
        compiler_params=pltpu.CompilerParams(
            dimension_semantics=("parallel", "arbitrary"),
            vmem_limit_bytes=VMEM_LIMIT),
    )(w_flat, p, x)

    # ---------------- Stage B: lane-dense gate apply + residual ReLU ----------------
    x2 = x.reshape(N, C, HW)          # contiguous views: no HBM copy
    g2 = gate.reshape(N, 1, HW)

    cb = _choose_channel_block(C, HW * elem, BLOCK_TARGET)
    nb = _largest_divisor_leq(N, max(1, (2 * BLOCK_TARGET) // (cb * HW * elem)))
    if N > 1 and nb == N and cb == C:
        # keep at least 2 parallel grid steps (v7x has 2 TensorCores per chip)
        nb = _largest_divisor_leq(N, N // 2)

    out2 = pl.pallas_call(
        apply_kernel,
        out_shape=jax.ShapeDtypeStruct((N, C, HW), x.dtype),
        grid=(N // nb, C // cb),
        in_specs=[
            pl.BlockSpec((nb, cb, HW), lambda i, j: (i, j, 0)),
            pl.BlockSpec((nb, 1, HW), lambda i, j: (i, 0, 0)),
        ],
        out_specs=pl.BlockSpec((nb, cb, HW), lambda i, j: (i, j, 0)),
        compiler_params=pltpu.CompilerParams(
            dimension_semantics=("parallel", "parallel"),
            vmem_limit_bytes=VMEM_LIMIT),
    )(x2, g2)

    return out2.reshape(N, C, H, W)


def cbam1_ref(x, conv_w, bn_gamma, bn_beta, bn_mean, bn_var, eps=1e-5):
    """Pure-JAX reference of the same forward pass."""
    mx = jnp.max(x, axis=1, keepdims=True)
    mn = jnp.mean(x, axis=1, keepdims=True)
    pooled = jnp.concatenate([mx, mn], axis=1)                    # (N, 2, H, W)
    conv = lax.conv_general_dilated(
        pooled, conv_w, window_strides=(1, 1),
        padding=((PAD, PAD), (PAD, PAD)),
        dimension_numbers=("NCHW", "OIHW", "NCHW"))
    bn = ((conv - bn_mean[None, :, None, None])
          / jnp.sqrt(bn_var + eps)[None, :, None, None]
          * bn_gamma[None, :, None, None] + bn_beta[None, :, None, None])
    gate = jax.nn.sigmoid(bn)
    return jnp.maximum(x * gate + x, 0.0)


if __name__ == "__main__":
    key = jax.random.PRNGKey(0)
    k1, k2, k3, k4, k5, k6 = jax.random.split(key, 6)

    # Deterministic synthetic parameters (shapes from the module's __init__).
    x = jax.random.normal(k1, (2, 4, 16, 16), jnp.float32)
    conv_w = jax.random.normal(k2, (1, 2, K, K), jnp.float32) / math.sqrt(2 * K * K)
    bn_gamma = jax.random.uniform(k3, (1,), jnp.float32, 0.5, 1.5)
    bn_beta = jax.random.normal(k4, (1,), jnp.float32) * 0.1
    bn_mean = jax.random.normal(k5, (1,), jnp.float32) * 0.1
    bn_var = jax.random.uniform(k6, (1,), jnp.float32, 0.5, 1.5)

    out = cbam1_forward(x, conv_w, bn_gamma, bn_beta, bn_mean, bn_var)
    jax.block_until_ready(out)

    ref = cbam1_ref(x, conv_w, bn_gamma, bn_beta, bn_mean, bn_var)
    assert out.shape == ref.shape == x.shape
    assert jnp.allclose(out, ref, atol=1e-5, rtol=1e-5), float(jnp.max(jnp.abs(out - ref)))

    print("KERNEL_OK")
</pallas_src>

<mosaic_0001>
module attributes {stable_mosaic.version = 11 : i64} {
  func.func @gate_kernel(%arg0: i32, %arg1: i32, %arg2: memref<98xf32, #tpu.memory_space<smem>>, %arg3: memref<2xf32, #tpu.memory_space<smem>>, %arg4: memref<1x4x16x16xf32, #tpu.memory_space<vmem>>, %arg5: memref<1x16x16xf32, #tpu.memory_space<vmem>>, %arg6: memref<16x16xf32, #tpu.memory_space<vmem>>, %arg7: memref<16x16xf32, #tpu.memory_space<vmem>>) attributes {dimension_semantics = [#tpu.dimension_semantics<parallel>, #tpu.dimension_semantics<arbitrary>], iteration_bounds = array<i64: 2, 1>, scalar_prefetch = 0 : i64, scratch_operands = 2 : i64, tpu.core_type = #tpu.core_type<tc>, window_params = [{transform_indices = @transform_0, window_bounds = array<i64: 98>}, {transform_indices = @transform_1, window_bounds = array<i64: 2>}, {transform_indices = @transform_2, window_bounds = array<i64: 1, 4, 16, 16>}, {transform_indices = @transform_3, window_bounds = array<i64: 1, 16, 16>}]} {
    %c0 = arith.constant 0 : index
    %c0_0 = arith.constant 0 : index
    %c0_1 = arith.constant 0 : index
    %c0_2 = arith.constant 0 : index
    %0 = vector.load %arg4[%c0, %c0_0, %c0_1, %c0_2] : memref<1x4x16x16xf32, #tpu.memory_space<vmem>>, vector<1x4x16x16xf32>
    %1 = vector.shape_cast %0 : vector<1x4x16x16xf32> to vector<4x16x16xf32>
    %c0_i32 = arith.constant 0 : i32
    %2 = arith.cmpi eq, %arg1, %c0_i32 : i32
    %3 = arith.extui %2 : i1 to i32
    %c0_i32_3 = arith.constant 0 : i32
    %4 = arith.cmpi ne, %3, %c0_i32_3 : i32
    scf.if %4 {
      %cst_15 = arith.constant 0xFF800000 : f32
      %16 = vector.broadcast %cst_15 : f32 to vector<16x16xf32>
      %c0_16 = arith.constant 0 : index
      %c0_17 = arith.constant 0 : index
      %17 = vector.load %arg6[%c0_16, %c0_17] : memref<16x16xf32, #tpu.memory_space<vmem>>, vector<16x16xf32>
      tpu.vector_store %arg6[%c0_16, %c0_17], %16 {strides = array<i32>} : memref<16x16xf32, #tpu.memory_space<vmem>>, vector<16x16xf32>,
      %cst_18 = arith.constant 0.000000e+00 : f32
      %18 = vector.broadcast %cst_18 : f32 to vector<16x16xf32>
      %c0_19 = arith.constant 0 : index
      %c0_20 = arith.constant 0 : index
      %19 = vector.load %arg7[%c0_19, %c0_20] : memref<16x16xf32, #tpu.memory_space<vmem>>, vector<16x16xf32>
      tpu.vector_store %arg7[%c0_19, %c0_20], %18 {strides = array<i32>} : memref<16x16xf32, #tpu.memory_space<vmem>>, vector<16x16xf32>,
    } else {
    }
    %c0_4 = arith.constant 0 : index
    %c0_5 = arith.constant 0 : index
    %5 = vector.load %arg6[%c0_4, %c0_5] : memref<16x16xf32, #tpu.memory_space<vmem>>, vector<16x16xf32>
    %cst = arith.constant dense<0xFF800000> : vector<16x16xf32>
    %6 = vector.multi_reduction <maximumf>, %1, %cst [0] : vector<4x16x16xf32> to vector<16x16xf32>
    %7 = arith.maximumf %5, %6 : vector<16x16xf32>
    %c0_6 = arith.constant 0 : index
    %c0_7 = arith.constant 0 : index
    %8 = vector.load %arg6[%c0_6, %c0_7] : memref<16x16xf32, #tpu.memory_space<vmem>>, vector<16x16xf32>
    tpu.vector_store %arg6[%c0_6, %c0_7], %7 {strides = array<i32>} : memref<16x16xf32, #tpu.memory_space<vmem>>, vector<16x16xf32>,
    %c0_8 = arith.constant 0 : index
    %c0_9 = arith.constant 0 : index
    %9 = vector.load %arg7[%c0_8, %c0_9] : memref<16x16xf32, #tpu.memory_space<vmem>>, vector<16x16xf32>
    %cst_10 = arith.constant dense<0.000000e+00> : vector<16x16xf32>
    %10 = vector.multi_reduction <add>, %1, %cst_10 [0] : vector<4x16x16xf32> to vector<16x16xf32>
    %11 = arith.addf %9, %10 : vector<16x16xf32>
    %c0_11 = arith.constant 0 : index
    %c0_12 = arith.constant 0 : index
    %12 = vector.load %arg7[%c0_11, %c0_12] : memref<16x16xf32, #tpu.memory_space<vmem>>, vector<16x16xf32>
    tpu.vector_store %arg7[%c0_11, %c0_12], %11 {strides = array<i32>} : memref<16x16xf32, #tpu.memory_space<vmem>>, vector<16x16xf32>,
    %c0_i32_13 = arith.constant 0 : i32
    %13 = arith.cmpi eq, %arg1, %c0_i32_13 : i32
    %14 = arith.extui %13 : i1 to i32
    %c0_i32_14 = arith.constant 0 : i32
    %15 = arith.cmpi ne, %14, %c0_i32_14 : i32
    scf.if %15 {
      %c0_15 = arith.constant 0 : index
      %c0_16 = arith.constant 0 : index
      %16 = vector.load %arg6[%c0_15, %c0_16] : memref<16x16xf32, #tpu.memory_space<vmem>>, vector<16x16xf32>
      %c0_17 = arith.constant 0 : index
      %c0_18 = arith.constant 0 : index
      %17 = vector.load %arg7[%c0_17, %c0_18] : memref<16x16xf32, #tpu.memory_space<vmem>>, vector<16x16xf32>
      %cst_19 = arith.constant 2.500000e-01 : f32
      %18 = vector.broadcast %cst_19 : f32 to vector<16x16xf32>
      %19 = arith.mulf %17, %18 : vector<16x16xf32>
      %cst_20 = arith.constant 0.000000e+00 : f32
      %20 = vector.broadcast %cst_20 : f32 to vector<16x3xf32>
      %21 = tpu.concatenate %20, %16, %20 in 1 : vector<16x3xf32>, vector<16x16xf32>, vector<16x3xf32> -> vector<16x22xf32>
      %cst_21 = arith.constant 0.000000e+00 : f32
      %22 = vector.broadcast %cst_21 : f32 to vector<3x22xf32>
      %23 = tpu.concatenate %22, %21, %22 in 0 : vector<3x22xf32>, vector<16x22xf32>, vector<3x22xf32> -> vector<22x22xf32>
      %cst_22 = arith.constant 0.000000e+00 : f32
      %24 = vector.broadcast %cst_22 : f32 to vector<16x3xf32>
      %25 = tpu.concatenate %24, %19, %24 in 1 : vector<16x3xf32>, vector<16x16xf32>, vector<16x3xf32> -> vector<16x22xf32>
      %cst_23 = arith.constant 0.000000e+00 : f32
      %26 = vector.broadcast %cst_23 : f32 to vector<3x22xf32>
      %27 = tpu.concatenate %26, %25, %26 in 0 : vector<3x22xf32>, vector<16x22xf32>, vector<3x22xf32> -> vector<22x22xf32>
      %cst_24 = arith.constant 0.000000e+00 : f32
      %28 = vector.broadcast %cst_24 : f32 to vector<16x16xf32>
      %cst_25 = arith.constant 0.000000e+00 : f32
      %29 = vector.broadcast %cst_25 : f32 to vector<16x16xf32>
      %30 = vector.extract_strided_slice %23 {offsets = [0, 0], sizes = [22, 16], strides = [1, 1]} : vector<22x22xf32> to vector<22x16xf32>
      %31 = vector.extract_strided_slice %27 {offsets = [0, 0], sizes = [22, 16], strides = [1, 1]} : vector<22x22xf32> to vector<22x16xf32>
      %32 = vector.extract_strided_slice %30 {offsets = [0, 0], sizes = [16, 16], strides = [1, 1]} : vector<22x16xf32> to vector<16x16xf32>
      %c0_26 = arith.constant 0 : index
      %33 = memref.load %arg2[%c0_26] : memref<98xf32, #tpu.memory_space<smem>>
      %34 = vector.broadcast %33 : f32 to vector<16x16xf32>
      %35 = arith.mulf %32, %34 : vector<16x16xf32>
      %36 = arith.addf %28, %35 : vector<16x16xf32>
      %37 = vector.extract_strided_slice %31 {offsets = [0, 0], sizes = [16, 16], strides = [1, 1]} : vector<22x16xf32> to vector<16x16xf32>
      %c49 = arith.constant 49 : index
      %38 = memref.load %arg2[%c49] : memref<98xf32, #tpu.memory_space<smem>>
      %39 = vector.broadcast %38 : f32 to vector<16x16xf32>
      %40 = arith.mulf %37, %39 : vector<16x16xf32>
      %41 = arith.addf %29, %40 : vector<16x16xf32>
      %42 = vector.extract_strided_slice %30 {offsets = [1, 0], sizes = [16, 16], strides = [1, 1]} : vector<22x16xf32> to vector<16x16xf32>
      %c7 = arith.constant 7 : index
      %43 = memref.load %arg2[%c7] : memref<98xf32, #tpu.memory_space<smem>>
      %44 = vector.broadcast %43 : f32 to vector<16x16xf32>
      %45 = arith.mulf %42, %44 : vector<16x16xf32>
      %46 = arith.addf %36, %45 : vector<16x16xf32>
      %47 = vector.extract_strided_slice %31 {offsets = [1, 0], sizes = [16, 16], strides = [1, 1]} : vector<22x16xf32> to vector<16x16xf32>
      %c56 = arith.constant 56 : index
      %48 = memref.load %arg2[%c56] : memref<98xf32, #tpu.memory_space<smem>>
      %49 = vector.broadcast %48 : f32 to vector<16x16xf32>
      %50 = arith.mulf %47, %49 : vector<16x16xf32>
      %51 = arith.addf %41, %50 : vector<16x16xf32>
      %52 = vector.extract_strided_slice %30 {offsets = [2, 0], sizes = [16, 16], strides = [1, 1]} : vector<22x16xf32> to vector<16x16xf32>
      %c14 = arith.constant 14 : index
      %53 = memref.load %arg2[%c14] : memref<98xf32, #tpu.memory_space<smem>>
      %54 = vector.broadcast %53 : f32 to vector<16x16xf32>
      %55 = arith.mulf %52, %54 : vector<16x16xf32>
      %56 = arith.addf %46, %55 : vector<16x16xf32>
      %57 = vector.extract_strided_slice %31 {offsets = [2, 0], sizes = [16, 16], strides = [1, 1]} : vector<22x16xf32> to vector<16x16xf32>
      %c63 = arith.constant 63 : index
      %58 = memref.load %arg2[%c63] : memref<98xf32, #tpu.memory_space<smem>>
      %59 = vector.broadcast %58 : f32 to vector<16x16xf32>
      %60 = arith.mulf %57, %59 : vector<16x16xf32>
      %61 = arith.addf %51, %60 : vector<16x16xf32>
      %62 = vector.extract_strided_slice %30 {offsets = [3, 0], sizes = [16, 16], strides = [1, 1]} : vector<22x16xf32> to vector<16x16xf32>
      %c21 = arith.constant 21 : index
      %63 = memref.load %arg2[%c21] : memref<98xf32, #tpu.memory_space<smem>>
      %64 = vector.broadcast %63 : f32 to vector<16x16xf32>
      %65 = arith.mulf %62, %64 : vector<16x16xf32>
      %66 = arith.addf %56, %65 : vector<16x16xf32>
      %67 = vector.extract_strided_slice %31 {offsets = [3, 0], sizes = [16, 16], strides = [1, 1]} : vector<22x16xf32> to vector<16x16xf32>
      %c70 = arith.constant 70 : index
      %68 = memref.load %arg2[%c70] : memref<98xf32, #tpu.memory_space<smem>>
      %69 = vector.broadcast %68 : f32 to vector<16x16xf32>
      %70 = arith.mulf %67, %69 : vector<16x16xf32>
      %71 = arith.addf %61, %70 : vector<16x16xf32>
      %72 = vector.extract_strided_slice %30 {offsets = [4, 0], sizes = [16, 16], strides = [1, 1]} : vector<22x16xf32> to vector<16x16xf32>
      %c28 = arith.constant 28 : index
      %73 = memref.load %arg2[%c28] : memref<98xf32, #tpu.memory_space<smem>>
      %74 = vector.broadcast %73 : f32 to vector<16x16xf32>
      %75 = arith.mulf %72, %74 : vector<16x16xf32>
      %76 = arith.addf %66, %75 : vector<16x16xf32>
      %77 = vector.extract_strided_slice %31 {offsets = [4, 0], sizes = [16, 16], strides = [1, 1]} : vector<22x16xf32> to vector<16x16xf32>
      %c77 = arith.constant 77 : index
      %78 = memref.load %arg2[%c77] : memref<98xf32, #tpu.memory_space<smem>>
      %79 = vector.broadcast %78 : f32 to vector<16x16xf32>
      %80 = arith.mulf %77, %79 : vector<16x16xf32>
      %81 = arith.addf %71, %80 : vector<16x16xf32>
      %82 = vector.extract_strided_slice %30 {offsets = [5, 0], sizes = [16, 16], strides = [1, 1]} : vector<22x16xf32> to vector<16x16xf32>
      %c35 = arith.constant 35 : index
      %83 = memref.load %arg2[%c35] : memref<98xf32, #tpu.memory_space<smem>>
      %84 = vector.broadcast %83 : f32 to vector<16x16xf32>
      %85 = arith.mulf %82, %84 : vector<16x16xf32>
      %86 = arith.addf %76, %85 : vector<16x16xf32>
      %87 = vector.extract_strided_slice %31 {offsets = [5, 0], sizes = [16, 16], strides = [1, 1]} : vector<22x16xf32> to vector<16x16xf32>
      %c84 = arith.constant 84 : index
      %88 = memref.load %arg2[%c84] : memref<98xf32, #tpu.memory_space<smem>>
      %89 = vector.broadcast %88 : f32 to vector<16x16xf32>
      %90 = arith.mulf %87, %89 : vector<16x16xf32>
      %91 = arith.addf %81, %90 : vector<16x16xf32>
      %92 = vector.extract_strided_slice %30 {offsets = [6, 0], sizes = [16, 16], strides = [1, 1]} : vector<22x16xf32> to vector<16x16xf32>
      %c42 = arith.constant 42 : index
      %93 = memref.load %arg2[%c42] : memref<98xf32, #tpu.memory_space<smem>>
      %94 = vector.broadcast %93 : f32 to vector<16x16xf32>
      %95 = arith.mulf %92, %94 : vector<16x16xf32>
      %96 = arith.addf %86, %95 : vector<16x16xf32>
      %97 = vector.extract_strided_slice %31 {offsets = [6, 0], sizes = [16, 16], strides = [1, 1]} : vector<22x16xf32> to vector<16x16xf32>
      %c91 = arith.constant 91 : index
      %98 = memref.load %arg2[%c91] : memref<98xf32, #tpu.memory_space<smem>>
      %99 = vector.broadcast %98 : f32 to vector<16x16xf32>
      %100 = arith.mulf %97, %99 : vector<16x16xf32>
      %101 = arith.addf %91, %100 : vector<16x16xf32>
      %102 = vector.extract_strided_slice %23 {offsets = [0, 1], sizes = [22, 16], strides = [1, 1]} : vector<22x22xf32> to vector<22x16xf32>
      %103 = vector.extract_strided_slice %27 {offsets = [0, 1], sizes = [22, 16], strides = [1, 1]} : vector<22x22xf32> to vector<22x16xf32>
      %104 = vector.extract_strided_slice %102 {offsets = [0, 0], sizes = [16, 16], strides = [1, 1]} : vector<22x16xf32> to vector<16x16xf32>
      %c1 = arith.constant 1 : index
      %105 = memref.load %arg2[%c1] : memref<98xf32, #tpu.memory_space<smem>>
      %106 = vector.broadcast %105 : f32 to vector<16x16xf32>
      %107 = arith.mulf %104, %106 : vector<16x16xf32>
      %108 = arith.addf %96, %107 : vector<16x16xf32>
      %109 = vector.extract_strided_slice %103 {offsets = [0, 0], sizes = [16, 16], strides = [1, 1]} : vector<22x16xf32> to vector<16x16xf32>
      %c50 = arith.constant 50 : index
      %110 = memref.load %arg2[%c50] : memref<98xf32, #tpu.memory_space<smem>>
      %111 = vector.broadcast %110 : f32 to vector<16x16xf32>
      %112 = arith.mulf %109, %111 : vector<16x16xf32>
      %113 = arith.addf %101, %112 : vector<16x16xf32>
      %114 = vector.extract_strided_slice %102 {offsets = [1, 0], sizes = [16, 16], strides = [1, 1]} : vector<22x16xf32> to vector<16x16xf32>
      %c8 = arith.constant 8 : index
      %115 = memref.load %arg2[%c8] : memref<98xf32, #tpu.memory_space<smem>>
      %116 = vector.broadcast %115 : f32 to vector<16x16xf32>
      %117 = arith.mulf %114, %116 : vector<16x16xf32>
      %118 = arith.addf %108, %117 : vector<16x16xf32>
      %119 = vector.extract_strided_slice %103 {offsets = [1, 0], sizes = [16, 16], strides = [1, 1]} : vector<22x16xf32> to vector<16x16xf32>
      %c57 = arith.constant 57 : index
      %120 = memref.load %arg2[%c57] : memref<98xf32, #tpu.memory_space<smem>>
      %121 = vector.broadcast %120 : f32 to vector<16x16xf32>
      %122 = arith.mulf %119, %121 : vector<16x16xf32>
      %123 = arith.addf %113, %122 : vector<16x16xf32>
      %124 = vector.extract_strided_slice %102 {offsets = [2, 0], sizes = [16, 16], strides = [1, 1]} : vector<22x16xf32> to vector<16x16xf32>
      %c15 = arith.constant 15 : index
      %125 = memref.load %arg2[%c15] : memref<98xf32, #tpu.memory_space<smem>>
      %126 = vector.broadcast %125 : f32 to vector<16x16xf32>
      %127 = arith.mulf %124, %126 : vector<16x16xf32>
      %128 = arith.addf %118, %127 : vector<16x16xf32>
      %129 = vector.extract_strided_slice %103 {offsets = [2, 0], sizes = [16, 16], strides = [1, 1]} : vector<22x16xf32> to vector<16x16xf32>
      %c64 = arith.constant 64 : index
      %130 = memref.load %arg2[%c64] : memref<98xf32, #tpu.memory_space<smem>>
      %131 = vector.broadcast %130 : f32 to vector<16x16xf32>
      %132 = arith.mulf %129, %131 : vector<16x16xf32>
      %133 = arith.addf %123, %132 : vector<16x16xf32>
      %134 = vector.extract_strided_slice %102 {offsets = [3, 0], sizes = [16, 16], strides = [1, 1]} : vector<22x16xf32> to vector<16x16xf32>
      %c22 = arith.constant 22 : index
      %135 = memref.load %arg2[%c22] : memref<98xf32, #tpu.memory_space<smem>>
      %136 = vector.broadcast %135 : f32 to vector<16x16xf32>
      %137 = arith.mulf %134, %136 : vector<16x16xf32>
      %138 = arith.addf %128, %137 : vector<16x16xf32>
      %139 = vector.extract_strided_slice %103 {offsets = [3, 0], sizes = [16, 16], strides = [1, 1]} : vector<22x16xf32> to vector<16x16xf32>
      %c71 = arith.constant 71 : index
      %140 = memref.load %arg2[%c71] : memref<98xf32, #tpu.memory_space<smem>>
      %141 = vector.broadcast %140 : f32 to vector<16x16xf32>
      %142 = arith.mulf %139, %141 : vector<16x16xf32>
      %143 = arith.addf %133, %142 : vector<16x16xf32>
      %144 = vector.extract_strided_slice %102 {offsets = [4, 0], sizes = [16, 16], strides = [1, 1]} : vector<22x16xf32> to vector<16x16xf32>
      %c29 = arith.constant 29 : index
      %145 = memref.load %arg2[%c29] : memref<98xf32, #tpu.memory_space<smem>>
      %146 = vector.broadcast %145 : f32 to vector<16x16xf32>
      %147 = arith.mulf %144, %146 : vector<16x16xf32>
      %148 = arith.addf %138, %147 : vector<16x16xf32>
      %149 = vector.extract_strided_slice %103 {offsets = [4, 0], sizes = [16, 16], strides = [1, 1]} : vector<22x16xf32> to vector<16x16xf32>
      %c78 = arith.constant 78 : index
      %150 = memref.load %arg2[%c78] : memref<98xf32, #tpu.memory_space<smem>>
      %151 = vector.broadcast %150 : f32 to vector<16x16xf32>
      %152 = arith.mulf %149, %151 : vector<16x16xf32>
      %153 = arith.addf %143, %152 : vector<16x16xf32>
      %154 = vector.extract_strided_slice %102 {offsets = [5, 0], sizes = [16, 16], strides = [1, 1]} : vector<22x16xf32> to vector<16x16xf32>
      %c36 = arith.constant 36 : index
      %155 = memref.load %arg2[%c36] : memref<98xf32, #tpu.memory_space<smem>>
      %156 = vector.broadcast %155 : f32 to vector<16x16xf32>
      %157 = arith.mulf %154, %156 : vector<16x16xf32>
      %158 = arith.addf %148, %157 : vector<16x16xf32>
      %159 = vector.extract_strided_slice %103 {offsets = [5, 0], sizes = [16, 16], strides = [1, 1]} : vector<22x16xf32> to vector<16x16xf32>
      %c85 = arith.constant 85 : index
      %160 = memref.load %arg2[%c85] : memref<98xf32, #tpu.memory_space<smem>>
      %161 = vector.broadcast %160 : f32 to vector<16x16xf32>
      %162 = arith.mulf %159, %161 : vector<16x16xf32>
      %163 = arith.addf %153, %162 : vector<16x16xf32>
      %164 = vector.extract_strided_slice %102 {offsets = [6, 0], sizes = [16, 16], strides = [1, 1]} : vector<22x16xf32> to vector<16x16xf32>
      %c43 = arith.constant 43 : index
      %165 = memref.load %arg2[%c43] : memref<98xf32, #tpu.memory_space<smem>>
      %166 = vector.broadcast %165 : f32 to vector<16x16xf32>
      %167 = arith.mulf %164, %166 : vector<16x16xf32>
      %168 = arith.addf %158, %167 : vector<16x16xf32>
      %169 = vector.extract_strided_slice %103 {offsets = [6, 0], sizes = [16, 16], strides = [1, 1]} : vector<22x16xf32> to vector<16x16xf32>
      %c92 = arith.constant 92 : index
      %170 = memref.load %arg2[%c92] : memref<98xf32, #tpu.memory_space<smem>>
      %171 = vector.broadcast %170 : f32 to vector<16x16xf32>
      %172 = arith.mulf %169, %171 : vector<16x16xf32>
      %173 = arith.addf %163, %172 : vector<16x16xf32>
      %174 = vector.extract_strided_slice %23 {offsets = [0, 2], sizes = [22, 16], strides = [1, 1]} : vector<22x22xf32> to vector<22x16xf32>
      %175 = vector.extract_strided_slice %27 {offsets = [0, 2], sizes = [22, 16], strides = [1, 1]} : vector<22x22xf32> to vector<22x16xf32>
      %176 = vector.extract_strided_slice %174 {offsets = [0, 0], sizes = [16, 16], strides = [1, 1]} : vector<22x16xf32> to vector<16x16xf32>
      %c2 = arith.constant 2 : index
      %177 = memref.load %arg2[%c2] : memref<98xf32, #tpu.memory_space<smem>>
      %178 = vector.broadcast %177 : f32 to vector<16x16xf32>
      %179 = arith.mulf %176, %178 : vector<16x16xf32>
      %180 = arith.addf %168, %179 : vector<16x16xf32>
      %181 = vector.extract_strided_slice %175 {offsets = [0, 0], sizes = [16, 16], strides = [1, 1]} : vector<22x16xf32> to vector<16x16xf32>
      %c51 = arith.constant 51 : index
      %182 = memref.load %arg2[%c51] : memref<98xf32, #tpu.memory_space<smem>>
      %183 = vector.broadcast %182 : f32 to vector<16x16xf32>
      %184 = arith.mulf %181, %183 : vector<16x16xf32>
      %185 = arith.addf %173, %184 : vector<16x16xf32>
      %186 = vector.extract_strided_slice %174 {offsets = [1, 0], sizes = [16, 16], strides = [1, 1]} : vector<22x16xf32> to vector<16x16xf32>
      %c9 = arith.constant 9 : index
      %187 = memref.load %arg2[%c9] : memref<98xf32, #tpu.memory_space<smem>>
      %188 = vector.broadcast %187 : f32 to vector<16x16xf32>
      %189 = arith.mulf %186, %188 : vector<16x16xf32>
      %190 = arith.addf %180, %189 : vector<16x16xf32>
      %191 = vector.extract_strided_slice %175 {offsets = [1, 0], sizes = [16, 16], strides = [1, 1]} : vector<22x16xf32> to vector<16x16xf32>
      %c58 = arith.constant 58 : index
      %192 = memref.load %arg2[%c58] : memref<98xf32, #tpu.memory_space<smem>>
      %193 = vector.broadcast %192 : f32 to vector<16x16xf32>
      %194 = arith.mulf %191, %193 : vector<16x16xf32>
      %195 = arith.addf %185, %194 : vector<16x16xf32>
      %196 = vector.extract_strided_slice %174 {offsets = [2, 0], sizes = [16, 16], strides = [1, 1]} : vector<22x16xf32> to vector<16x16xf32>
      %c16 = arith.constant 16 : index
      %197 = memref.load %arg2[%c16] : memref<98xf32, #tpu.memory_space<smem>>
      %198 = vector.broadcast %197 : f32 to vector<16x16xf32>
      %199 = arith.mulf %196, %198 : vector<16x16xf32>
      %200 = arith.addf %190, %199 : vector<16x16xf32>
      %201 = vector.extract_strided_slice %175 {offsets = [2, 0], sizes = [16, 16], strides = [1, 1]} : vector<22x16xf32> to vector<16x16xf32>
      %c65 = arith.constant 65 : index
      %202 = memref.load %arg2[%c65] : memref<98xf32, #tpu.memory_space<smem>>
      %203 = vector.broadcast %202 : f32 to vector<16x16xf32>
      %204 = arith.mulf %201, %203 : vector<16x16xf32>
      %205 = arith.addf %195, %204 : vector<16x16xf32>
      %206 = vector.extract_strided_slice %174 {offsets = [3, 0], sizes = [16, 16], strides = [1, 1]} : vector<22x16xf32> to vector<16x16xf32>
      %c23 = arith.constant 23 : index
      %207 = memref.load %arg2[%c23] : memref<98xf32, #tpu.memory_space<smem>>
      %208 = vector.broadcast %207 : f32 to vector<16x16xf32>
      %209 = arith.mulf %206, %208 : vector<16x16xf32>
      %210 = arith.addf %200, %209 : vector<16x16xf32>
      %211 = vector.extract_strided_slice %175 {offsets = [3, 0], sizes = [16, 16], strides = [1, 1]} : vector<22x16xf32> to vector<16x16xf32>
      %c72 = arith.constant 72 : index
      %212 = memref.load %arg2[%c72] : memref<98xf32, #tpu.memory_space<smem>>
      %213 = vector.broadcast %212 : f32 to vector<16x16xf32>
      %214 = arith.mulf %211, %213 : vector<16x16xf32>
      %215 = arith.addf %205, %214 : vector<16x16xf32>
      %216 = vector.extract_strided_slice %174 {offsets = [4, 0], sizes = [16, 16], strides = [1, 1]} : vector<22x16xf32> to vector<16x16xf32>
      %c30 = arith.constant 30 : index
      %217 = memref.load %arg2[%c30] : memref<98xf32, #tpu.memory_space<smem>>
      %218 = vector.broadcast %217 : f32 to vector<16x16xf32>
      %219 = arith.mulf %216, %218 : vector<16x16xf32>
      %220 = arith.addf %210, %219 : vector<16x16xf32>
      %221 = vector.extract_strided_slice %175 {offsets = [4, 0], sizes = [16, 16], strides = [1, 1]} : vector<22x16xf32> to vector<16x16xf32>
      %c79 = arith.constant 79 : index
      %222 = memref.load %arg2[%c79] : memref<98xf32, #tpu.memory_space<smem>>
      %223 = vector.broadcast %222 : f32 to vector<16x16xf32>
      %224 = arith.mulf %221, %223 : vector<16x16xf32>
      %225 = arith.addf %215, %224 : vector<16x16xf32>
      %226 = vector.extract_strided_slice %174 {offsets = [5, 0], sizes = [16, 16], strides = [1, 1]} : vector<22x16xf32> to vector<16x16xf32>
      %c37 = arith.constant 37 : index
      %227 = memref.load %arg2[%c37] : memref<98xf32, #tpu.memory_space<smem>>
      %228 = vector.broadcast %227 : f32 to vector<16x16xf32>
      %229 = arith.mulf %226, %228 : vector<16x16xf32>
      %230 = arith.addf %220, %229 : vector<16x16xf32>
      %231 = vector.extract_strided_slice %175 {offsets = [5, 0], sizes = [16, 16], strides = [1, 1]} : vector<22x16xf32> to vector<16x16xf32>
      %c86 = arith.constant 86 : index
      %232 = memref.load %arg2[%c86] : memref<98xf32, #tpu.memory_space<smem>>
      %233 = vector.broadcast %232 : f32 to vector<16x16xf32>
      %234 = arith.mulf %231, %233 : vector<16x16xf32>
      %235 = arith.addf %225, %234 : vector<16x16xf32>
      %236 = vector.extract_strided_slice %174 {offsets = [6, 0], sizes = [16, 16], strides = [1, 1]} : vector<22x16xf32> to vector<16x16xf32>
      %c44 = arith.constant 44 : index
      %237 = memref.load %arg2[%c44] : memref<98xf32, #tpu.memory_space<smem>>
      %238 = vector.broadcast %237 : f32 to vector<16x16xf32>
      %239 = arith.mulf %236, %238 : vector<16x16xf32>
      %240 = arith.addf %230, %239 : vector<16x16xf32>
      %241 = vector.extract_strided_slice %175 {offsets = [6, 0], sizes = [16, 16], strides = [1, 1]} : vector<22x16xf32> to vector<16x16xf32>
      %c93 = arith.constant 93 : index
      %242 = memref.load %arg2[%c93] : memref<98xf32, #tpu.memory_space<smem>>
      %243 = vector.broadcast %242 : f32 to vector<16x16xf32>
      %244 = arith.mulf %241, %243 : vector<16x16xf32>
      %245 = arith.addf %235, %244 : vector<16x16xf32>
      %246 = vector.extract_strided_slice %23 {offsets = [0, 3], sizes = [22, 16], strides = [1, 1]} : vector<22x22xf32> to vector<22x16xf32>
      %247 = vector.extract_strided_slice %27 {offsets = [0, 3], sizes = [22, 16], strides = [1, 1]} : vector<22x22xf32> to vector<22x16xf32>
      %248 = vector.extract_strided_slice %246 {offsets = [0, 0], sizes = [16, 16], strides = [1, 1]} : vector<22x16xf32> to vector<16x16xf32>
      %c3 = arith.constant 3 : index
      %249 = memref.load %arg2[%c3] : memref<98xf32, #tpu.memory_space<smem>>
      %250 = vector.broadcast %249 : f32 to vector<16x16xf32>
      %251 = arith.mulf %248, %250 : vector<16x16xf32>
      %252 = arith.addf %240, %251 : vector<16x16xf32>
      %253 = vector.extract_strided_slice %247 {offsets = [0, 0], sizes = [16, 16], strides = [1, 1]} : vector<22x16xf32> to vector<16x16xf32>
      %c52 = arith.constant 52 : index
      %254 = memref.load %arg2[%c52] : memref<98xf32, #tpu.memory_space<smem>>
      %255 = vector.broadcast %254 : f32 to vector<16x16xf32>
      %256 = arith.mulf %253, %255 : vector<16x16xf32>
      %257 = arith.addf %245, %256 : vector<16x16xf32>
      %258 = vector.extract_strided_slice %246 {offsets = [1, 0], sizes = [16, 16], strides = [1, 1]} : vector<22x16xf32> to vector<16x16xf32>
      %c10 = arith.constant 10 : index
      %259 = memref.load %arg2[%c10] : memref<98xf32, #tpu.memory_space<smem>>
      %260 = vector.broadcast %259 : f32 to vector<16x16xf32>
      %261 = arith.mulf %258, %260 : vector<16x16xf32>
      %262 = arith.addf %252, %261 : vector<16x16xf32>
      %263 = vector.extract_strided_slice %247 {offsets = [1, 0], sizes = [16, 16], strides = [1, 1]} : vector<22x16xf32> to vector<16x16xf32>
      %c59 = arith.constant 59 : index
      %264 = memref.load %arg2[%c59] : memref<98xf32, #tpu.memory_space<smem>>
      %265 = vector.broadcast %264 : f32 to vector<16x16xf32>
      %266 = arith.mulf %263, %265 : vector<16x16xf32>
      %267 = arith.addf %257, %266 : vector<16x16xf32>
      %268 = vector.extract_strided_slice %246 {offsets = [2, 0], sizes = [16, 16], strides = [1, 1]} : vector<22x16xf32> to vector<16x16xf32>
      %c17 = arith.constant 17 : index
      %269 = memref.load %arg2[%c17] : memref<98xf32, #tpu.memory_space<smem>>
      %270 = vector.broadcast %269 : f32 to vector<16x16xf32>
      %271 = arith.mulf %268, %270 : vector<16x16xf32>
      %272 = arith.addf %262, %271 : vector<16x16xf32>
      %273 = vector.extract_strided_slice %247 {offsets = [2, 0], sizes = [16, 16], strides = [1, 1]} : vector<22x16xf32> to vector<16x16xf32>
      %c66 = arith.constant 66 : index
      %274 = memref.load %arg2[%c66] : memref<98xf32, #tpu.memory_space<smem>>
      %275 = vector.broadcast %274 : f32 to vector<16x16xf32>
      %276 = arith.mulf %273, %275 : vector<16x16xf32>
      %277 = arith.addf %267, %276 : vector<16x16xf32>
      %278 = vector.extract_strided_slice %246 {offsets = [3, 0], sizes = [16, 16], strides = [1, 1]} : vector<22x16xf32> to vector<16x16xf32>
      %c24 = arith.constant 24 : index
      %279 = memref.load %arg2[%c24] : memref<98xf32, #tpu.memory_space<smem>>
      %280 = vector.broadcast %279 : f32 to vector<16x16xf32>
      %281 = arith.mulf %278, %280 : vector<16x16xf32>
      %282 = arith.addf %272, %281 : vector<16x16xf32>
      %283 = vector.extract_strided_slice %247 {offsets = [3, 0], sizes = [16, 16], strides = [1, 1]} : vector<22x16xf32> to vector<16x16xf32>
      %c73 = arith.constant 73 : index
      %284 = memref.load %arg2[%c73] : memref<98xf32, #tpu.memory_space<smem>>
      %285 = vector.broadcast %284 : f32 to vector<16x16xf32>
      %286 = arith.mulf %283, %285 : vector<16x16xf32>
      %287 = arith.addf %277, %286 : vector<16x16xf32>
      %288 = vector.extract_strided_slice %246 {offsets = [4, 0], sizes = [16, 16], strides = [1, 1]} : vector<22x16xf32> to vector<16x16xf32>
      %c31 = arith.constant 31 : index
      %289 = memref.load %arg2[%c31] : memref<98xf32, #tpu.memory_space<smem>>
      %290 = vector.broadcast %289 : f32 to vector<16x16xf32>
      %291 = arith.mulf %288, %290 : vector<16x16xf32>
      %292 = arith.addf %282, %291 : vector<16x16xf32>
      %293 = vector.extract_strided_slice %247 {offsets = [4, 0], sizes = [16, 16], strides = [1, 1]} : vector<22x16xf32> to vector<16x16xf32>
      %c80 = arith.constant 80 : index
      %294 = memref.load %arg2[%c80] : memref<98xf32, #tpu.memory_space<smem>>
      %295 = vector.broadcast %294 : f32 to vector<16x16xf32>
      %296 = arith.mulf %293, %295 : vector<16x16xf32>
      %297 = arith.addf %287, %296 : vector<16x16xf32>
      %298 = vector.extract_strided_slice %246 {offsets = [5, 0], sizes = [16, 16], strides = [1, 1]} : vector<22x16xf32> to vector<16x16xf32>
      %c38 = arith.constant 38 : index
      %299 = memref.load %arg2[%c38] : memref<98xf32, #tpu.memory_space<smem>>
      %300 = vector.broadcast %299 : f32 to vector<16x16xf32>
      %301 = arith.mulf %298, %300 : vector<16x16xf32>
      %302 = arith.addf %292, %301 : vector<16x16xf32>
      %303 = vector.extract_strided_slice %247 {offsets = [5, 0], sizes = [16, 16], strides = [1, 1]} : vector<22x16xf32> to vector<16x16xf32>
      %c87 = arith.constant 87 : index
      %304 = memref.load %arg2[%c87] : memref<98xf32, #tpu.memory_space<smem>>
      %305 = vector.broadcast %304 : f32 to vector<16x16xf32>
      %306 = arith.mulf %303, %305 : vector<16x16xf32>
      %307 = arith.addf %297, %306 : vector<16x16xf32>
      %308 = vector.extract_strided_slice %246 {offsets = [6, 0], sizes = [16, 16], strides = [1, 1]} : vector<22x16xf32> to vector<16x16xf32>
      %c45 = arith.constant 45 : index
      %309 = memref.load %arg2[%c45] : memref<98xf32, #tpu.memory_space<smem>>
      %310 = vector.broadcast %309 : f32 to vector<16x16xf32>
      %311 = arith.mulf %308, %310 : vector<16x16xf32>
      %312 = arith.addf %302, %311 : vector<16x16xf32>
      %313 = vector.extract_strided_slice %247 {offsets = [6, 0], sizes = [16, 16], strides = [1, 1]} : vector<22x16xf32> to vector<16x16xf32>
      %c94 = arith.constant 94 : index
      %314 = memref.load %arg2[%c94] : memref<98xf32, #tpu.memory_space<smem>>
      %315 = vector.broadcast %314 : f32 to vector<16x16xf32>
      %316 = arith.mulf %313, %315 : vector<16x16xf32>
      %317 = arith.addf %307, %316 : vector<16x16xf32>
      %318 = vector.extract_strided_slice %23 {offsets = [0, 4], sizes = [22, 16], strides = [1, 1]} : vector<22x22xf32> to vector<22x16xf32>
      %319 = vector.extract_strided_slice %27 {offsets = [0, 4], sizes = [22, 16], strides = [1, 1]} : vector<22x22xf32> to vector<22x16xf32>
      %320 = vector.extract_strided_slice %318 {offsets = [0, 0], sizes = [16, 16], strides = [1, 1]} : vector<22x16xf32> to vector<16x16xf32>
      %c4 = arith.constant 4 : index
      %321 = memref.load %arg2[%c4] : memref<98xf32, #tpu.memory_space<smem>>
      %322 = vector.broadcast %321 : f32 to vector<16x16xf32>
      %323 = arith.mulf %320, %322 : vector<16x16xf32>
      %324 = arith.addf %312, %323 : vector<16x16xf32>
      %325 = vector.extract_strided_slice %319 {offsets = [0, 0], sizes = [16, 16], strides = [1, 1]} : vector<22x16xf32> to vector<16x16xf32>
      %c53 = arith.constant 53 : index
      %326 = memref.load %arg2[%c53] : memref<98xf32, #tpu.memory_space<smem>>
      %327 = vector.broadcast %326 : f32 to vector<16x16xf32>
      %328 = arith.mulf %325, %327 : vector<16x16xf32>
      %329 = arith.addf %317, %328 : vector<16x16xf32>
      %330 = vector.extract_strided_slice %318 {offsets = [1, 0], sizes = [16, 16], strides = [1, 1]} : vector<22x16xf32> to vector<16x16xf32>
      %c11 = arith.constant 11 : index
      %331 = memref.load %arg2[%c11] : memref<98xf32, #tpu.memory_space<smem>>
      %332 = vector.broadcast %331 : f32 to vector<16x16xf32>
      %333 = arith.mulf %330, %332 : vector<16x16xf32>
      %334 = arith.addf %324, %333 : vector<16x16xf32>
      %335 = vector.extract_strided_slice %319 {offsets = [1, 0], sizes = [16, 16], strides = [1, 1]} : vector<22x16xf32> to vector<16x16xf32>
      %c60 = arith.constant 60 : index
      %336 = memref.load %arg2[%c60] : memref<98xf32, #tpu.memory_space<smem>>
      %337 = vector.broadcast %336 : f32 to vector<16x16xf32>
      %338 = arith.mulf %335, %337 : vector<16x16xf32>
      %339 = arith.addf %329, %338 : vector<16x16xf32>
      %340 = vector.extract_strided_slice %318 {offsets = [2, 0], sizes = [16, 16], strides = [1, 1]} : vector<22x16xf32> to vector<16x16xf32>
      %c18 = arith.constant 18 : index
      %341 = memref.load %arg2[%c18] : memref<98xf32, #tpu.memory_space<smem>>
      %342 = vector.broadcast %341 : f32 to vector<16x16xf32>
      %343 = arith.mulf %340, %342 : vector<16x16xf32>
      %344 = arith.addf %334, %343 : vector<16x16xf32>
      %345 = vector.extract_strided_slice %319 {offsets = [2, 0], sizes = [16, 16], strides = [1, 1]} : vector<22x16xf32> to vector<16x16xf32>
      %c67 = arith.constant 67 : index
      %346 = memref.load %arg2[%c67] : memref<98xf32, #tpu.memory_space<smem>>
      %347 = vector.broadcast %346 : f32 to vector<16x16xf32>
      %348 = arith.mulf %345, %347 : vector<16x16xf32>
      %349 = arith.addf %339, %348 : vector<16x16xf32>
      %350 = vector.extract_strided_slice %318 {offsets = [3, 0], sizes = [16, 16], strides = [1, 1]} : vector<22x16xf32> to vector<16x16xf32>
      %c25 = arith.constant 25 : index
      %351 = memref.load %arg2[%c25] : memref<98xf32, #tpu.memory_space<smem>>
      %352 = vector.broadcast %351 : f32 to vector<16x16xf32>
      %353 = arith.mulf %350, %352 : vector<16x16xf32>
      %354 = arith.addf %344, %353 : vector<16x16xf32>
      %355 = vector.extract_strided_slice %319 {offsets = [3, 0], sizes = [16, 16], strides = [1, 1]} : vector<22x16xf32> to vector<16x16xf32>
      %c74 = arith.constant 74 : index
      %356 = memref.load %arg2[%c74] : memref<98xf32, #tpu.memory_space<smem>>
      %357 = vector.broadcast %356 : f32 to vector<16x16xf32>
      %358 = arith.mulf %355, %357 : vector<16x16xf32>
      %359 = arith.addf %349, %358 : vector<16x16xf32>
      %360 = vector.extract_strided_slice %318 {offsets = [4, 0], sizes = [16, 16], strides = [1, 1]} : vector<22x16xf32> to vector<16x16xf32>
      %c32 = arith.constant 32 : index
      %361 = memref.load %arg2[%c32] : memref<98xf32, #tpu.memory_space<smem>>
      %362 = vector.broadcast %361 : f32 to vector<16x16xf32>
      %363 = arith.mulf %360, %362 : vector<16x16xf32>
      %364 = arith.addf %354, %363 : vector<16x16xf32>
      %365 = vector.extract_strided_slice %319 {offsets = [4, 0], sizes = [16, 16], strides = [1, 1]} : vector<22x16xf32> to vector<16x16xf32>
      %c81 = arith.constant 81 : index
      %366 = memref.load %arg2[%c81] : memref<98xf32, #tpu.memory_space<smem>>
      %367 = vector.broadcast %366 : f32 to vector<16x16xf32>
      %368 = arith.mulf %365, %367 : vector<16x16xf32>
      %369 = arith.addf %359, %368 : vector<16x16xf32>
      %370 = vector.extract_strided_slice %318 {offsets = [5, 0], sizes = [16, 16], strides = [1, 1]} : vector<22x16xf32> to vector<16x16xf32>
      %c39 = arith.constant 39 : index
      %371 = memref.load %arg2[%c39] : memref<98xf32, #tpu.memory_space<smem>>
      %372 = vector.broadcast %371 : f32 to vector<16x16xf32>
      %373 = arith.mulf %370, %372 : vector<16x16xf32>
      %374 = arith.addf %364, %373 : vector<16x16xf32>
      %375 = vector.extract_strided_slice %319 {offsets = [5, 0], sizes = [16, 16], strides = [1, 1]} : vector<22x16xf32> to vector<16x16xf32>
      %c88 = arith.constant 88 : index
      %376 = memref.load %arg2[%c88] : memref<98xf32, #tpu.memory_space<smem>>
      %377 = vector.broadcast %376 : f32 to vector<16x16xf32>
      %378 = arith.mulf %375, %377 : vector<16x16xf32>
      %379 = arith.addf %369, %378 : vector<16x16xf32>
      %380 = vector.extract_strided_slice %318 {offsets = [6, 0], sizes = [16, 16], strides = [1, 1]} : vector<22x16xf32> to vector<16x16xf32>
      %c46 = arith.constant 46 : index
      %381 = memref.load %arg2[%c46] : memref<98xf32, #tpu.memory_space<smem>>
      %382 = vector.broadcast %381 : f32 to vector<16x16xf32>
      %383 = arith.mulf %380, %382 : vector<16x16xf32>
      %384 = arith.addf %374, %383 : vector<16x16xf32>
      %385 = vector.extract_strided_slice %319 {offsets = [6, 0], sizes = [16, 16], strides = [1, 1]} : vector<22x16xf32> to vector<16x16xf32>
      %c95 = arith.constant 95 : index
      %386 = memref.load %arg2[%c95] : memref<98xf32, #tpu.memory_space<smem>>
      %387 = vector.broadcast %386 : f32 to vector<16x16xf32>
      %388 = arith.mulf %385, %387 : vector<16x16xf32>
      %389 = arith.addf %379, %388 : vector<16x16xf32>
      %390 = vector.extract_strided_slice %23 {offsets = [0, 5], sizes = [22, 16], strides = [1, 1]} : vector<22x22xf32> to vector<22x16xf32>
      %391 = vector.extract_strided_slice %27 {offsets = [0, 5], sizes = [22, 16], strides = [1, 1]} : vector<22x22xf32> to vector<22x16xf32>
      %392 = vector.extract_strided_slice %390 {offsets = [0, 0], sizes = [16, 16], strides = [1, 1]} : vector<22x16xf32> to vector<16x16xf32>
      %c5 = arith.constant 5 : index
      %393 = memref.load %arg2[%c5] : memref<98xf32, #tpu.memory_space<smem>>
      %394 = vector.broadcast %393 : f32 to vector<16x16xf32>
      %395 = arith.mulf %392, %394 : vector<16x16xf32>
      %396 = arith.addf %384, %395 : vector<16x16xf32>
      %397 = vector.extract_strided_slice %391 {offsets = [0, 0], sizes = [16, 16], strides = [1, 1]} : vector<22x16xf32> to vector<16x16xf32>
      %c54 = arith.constant 54 : index
      %398 = memref.load %arg2[%c54] : memref<98xf32, #tpu.memory_space<smem>>
      %399 = vector.broadcast %398 : f32 to vector<16x16xf32>
      %400 = arith.mulf %397, %399 : vector<16x16xf32>
      %401 = arith.addf %389, %400 : vector<16x16xf32>
      %402 = vector.extract_strided_slice %390 {offsets = [1, 0], sizes = [16, 16], strides = [1, 1]} : vector<22x16xf32> to vector<16x16xf32>
      %c12 = arith.constant 12 : index
      %403 = memref.load %arg2[%c12] : memref<98xf32, #tpu.memory_space<smem>>
      %404 = vector.broadcast %403 : f32 to vector<16x16xf32>
      %405 = arith.mulf %402, %404 : vector<16x16xf32>
      %406 = arith.addf %396, %405 : vector<16x16xf32>
      %407 = vector.extract_strided_slice %391 {offsets = [1, 0], sizes = [16, 16], strides = [1, 1]} : vector<22x16xf32> to vector<16x16xf32>
      %c61 = arith.constant 61 : index
      %408 = memref.load %arg2[%c61] : memref<98xf32, #tpu.memory_space<smem>>
      %409 = vector.broadcast %408 : f32 to vector<16x16xf32>
      %410 = arith.mulf %407, %409 : vector<16x16xf32>
      %411 = arith.addf %401, %410 : vector<16x16xf32>
      %412 = vector.extract_strided_slice %390 {offsets = [2, 0], sizes = [16, 16], strides = [1, 1]} : vector<22x16xf32> to vector<16x16xf32>
      %c19 = arith.constant 19 : index
      %413 = memref.load %arg2[%c19] : memref<98xf32, #tpu.memory_space<smem>>
      %414 = vector.broadcast %413 : f32 to vector<16x16xf32>
      %415 = arith.mulf %412, %414 : vector<16x16xf32>
      %416 = arith.addf %406, %415 : vector<16x16xf32>
      %417 = vector.extract_strided_slice %391 {offsets = [2, 0], sizes = [16, 16], strides = [1, 1]} : vector<22x16xf32> to vector<16x16xf32>
      %c68 = arith.constant 68 : index
      %418 = memref.load %arg2[%c68] : memref<98xf32, #tpu.memory_space<smem>>
      %419 = vector.broadcast %418 : f32 to vector<16x16xf32>
      %420 = arith.mulf %417, %419 : vector<16x16xf32>
      %421 = arith.addf %411, %420 : vector<16x16xf32>
      %422 = vector.extract_strided_slice %390 {offsets = [3, 0], sizes = [16, 16], strides = [1, 1]} : vector<22x16xf32> to vector<16x16xf32>
      %c26 = arith.constant 26 : index
      %423 = memref.load %arg2[%c26] : memref<98xf32, #tpu.memory_space<smem>>
      %424 = vector.broadcast %423 : f32 to vector<16x16xf32>
      %425 = arith.mulf %422, %424 : vector<16x16xf32>
      %426 = arith.addf %416, %425 : vector<16x16xf32>
      %427 = vector.extract_strided_slice %391 {offsets = [3, 0], sizes = [16, 16], strides = [1, 1]} : vector<22x16xf32> to vector<16x16xf32>
      %c75 = arith.constant 75 : index
      %428 = memref.load %arg2[%c75] : memref<98xf32, #tpu.memory_space<smem>>
      %429 = vector.broadcast %428 : f32 to vector<16x16xf32>
      %430 = arith.mulf %427, %429 : vector<16x16xf32>
      %431 = arith.addf %421, %430 : vector<16x16xf32>
      %432 = vector.extract_strided_slice %390 {offsets = [4, 0], sizes = [16, 16], strides = [1, 1]} : vector<22x16xf32> to vector<16x16xf32>
      %c33 = arith.constant 33 : index
      %433 = memref.load %arg2[%c33] : memref<98xf32, #tpu.memory_space<smem>>
      %434 = vector.broadcast %433 : f32 to vector<16x16xf32>
      %435 = arith.mulf %432, %434 : vector<16x16xf32>
      %436 = arith.addf %426, %435 : vector<16x16xf32>
      %437 = vector.extract_strided_slice %391 {offsets = [4, 0], sizes = [16, 16], strides = [1, 1]} : vector<22x16xf32> to vector<16x16xf32>
      %c82 = arith.constant 82 : index
      %438 = memref.load %arg2[%c82] : memref<98xf32, #tpu.memory_space<smem>>
      %439 = vector.broadcast %438 : f32 to vector<16x16xf32>
      %440 = arith.mulf %437, %439 : vector<16x16xf32>
      %441 = arith.addf %431, %440 : vector<16x16xf32>
      %442 = vector.extract_strided_slice %390 {offsets = [5, 0], sizes = [16, 16], strides = [1, 1]} : vector<22x16xf32> to vector<16x16xf32>
      %c40 = arith.constant 40 : index
      %443 = memref.load %arg2[%c40] : memref<98xf32, #tpu.memory_space<smem>>
      %444 = vector.broadcast %443 : f32 to vector<16x16xf32>
      %445 = arith.mulf %442, %444 : vector<16x16xf32>
      %446 = arith.addf %436, %445 : vector<16x16xf32>
      %447 = vector.extract_strided_slice %391 {offsets = [5, 0], sizes = [16, 16], strides = [1, 1]} : vector<22x16xf32> to vector<16x16xf32>
      %c89 = arith.constant 89 : index
      %448 = memref.load %arg2[%c89] : memref<98xf32, #tpu.memory_space<smem>>
      %449 = vector.broadcast %448 : f32 to vector<16x16xf32>
      %450 = arith.mulf %447, %449 : vector<16x16xf32>
      %451 = arith.addf %441, %450 : vector<16x16xf32>
      %452 = vector.extract_strided_slice %390 {offsets = [6, 0], sizes = [16, 16], strides = [1, 1]} : vector<22x16xf32> to vector<16x16xf32>
      %c47 = arith.constant 47 : index
      %453 = memref.load %arg2[%c47] : memref<98xf32, #tpu.memory_space<smem>>
      %454 = vector.broadcast %453 : f32 to vector<16x16xf32>
      %455 = arith.mulf %452, %454 : vector<16x16xf32>
      %456 = arith.addf %446, %455 : vector<16x16xf32>
      %457 = vector.extract_strided_slice %391 {offsets = [6, 0], sizes = [16, 16], strides = [1, 1]} : vector<22x16xf32> to vector<16x16xf32>
      %c96 = arith.constant 96 : index
      %458 = memref.load %arg2[%c96] : memref<98xf32, #tpu.memory_space<smem>>
      %459 = vector.broadcast %458 : f32 to vector<16x16xf32>
      %460 = arith.mulf %457, %459 : vector<16x16xf32>
      %461 = arith.addf %451, %460 : vector<16x16xf32>
      %462 = vector.extract_strided_slice %23 {offsets = [0, 6], sizes = [22, 16], strides = [1, 1]} : vector<22x22xf32> to vector<22x16xf32>
      %463 = vector.extract_strided_slice %27 {offsets = [0, 6], sizes = [22, 16], strides = [1, 1]} : vector<22x22xf32> to vector<22x16xf32>
      %464 = vector.extract_strided_slice %462 {offsets = [0, 0], sizes = [16, 16], strides = [1, 1]} : vector<22x16xf32> to vector<16x16xf32>
      %c6 = arith.constant 6 : index
      %465 = memref.load %arg2[%c6] : memref<98xf32, #tpu.memory_space<smem>>
      %466 = vector.broadcast %465 : f32 to vector<16x16xf32>
      %467 = arith.mulf %464, %466 : vector<16x16xf32>
      %468 = arith.addf %456, %467 : vector<16x16xf32>
      %469 = vector.extract_strided_slice %463 {offsets = [0, 0], sizes = [16, 16], strides = [1, 1]} : vector<22x16xf32> to vector<16x16xf32>
      %c55 = arith.constant 55 : index
      %470 = memref.load %arg2[%c55] : memref<98xf32, #tpu.memory_space<smem>>
      %471 = vector.broadcast %470 : f32 to vector<16x16xf32>
      %472 = arith.mulf %469, %471 : vector<16x16xf32>
      %473 = arith.addf %461, %472 : vector<16x16xf32>
      %474 = vector.extract_strided_slice %462 {offsets = [1, 0], sizes = [16, 16], strides = [1, 1]} : vector<22x16xf32> to vector<16x16xf32>
      %c13 = arith.constant 13 : index
      %475 = memref.load %arg2[%c13] : memref<98xf32, #tpu.memory_space<smem>>
      %476 = vector.broadcast %475 : f32 to vector<16x16xf32>
      %477 = arith.mulf %474, %476 : vector<16x16xf32>
      %478 = arith.addf %468, %477 : vector<16x16xf32>
      %479 = vector.extract_strided_slice %463 {offsets = [1, 0], sizes = [16, 16], strides = [1, 1]} : vector<22x16xf32> to vector<16x16xf32>
      %c62 = arith.constant 62 : index
      %480 = memref.load %arg2[%c62] : memref<98xf32, #tpu.memory_space<smem>>
      %481 = vector.broadcast %480 : f32 to vector<16x16xf32>
      %482 = arith.mulf %479, %481 : vector<16x16xf32>
      %483 = arith.addf %473, %482 : vector<16x16xf32>
      %484 = vector.extract_strided_slice %462 {offsets = [2, 0], sizes = [16, 16], strides = [1, 1]} : vector<22x16xf32> to vector<16x16xf32>
      %c20 = arith.constant 20 : index
      %485 = memref.load %arg2[%c20] : memref<98xf32, #tpu.memory_space<smem>>
      %486 = vector.broadcast %485 : f32 to vector<16x16xf32>
      %487 = arith.mulf %484, %486 : vector<16x16xf32>
      %488 = arith.addf %478, %487 : vector<16x16xf32>
      %489 = vector.extract_strided_slice %463 {offsets = [2, 0], sizes = [16, 16], strides = [1, 1]} : vector<22x16xf32> to vector<16x16xf32>
      %c69 = arith.constant 69 : index
      %490 = memref.load %arg2[%c69] : memref<98xf32, #tpu.memory_space<smem>>
      %491 = vector.broadcast %490 : f32 to vector<16x16xf32>
      %492 = arith.mulf %489, %491 : vector<16x16xf32>
      %493 = arith.addf %483, %492 : vector<16x16xf32>
      %494 = vector.extract_strided_slice %462 {offsets = [3, 0], sizes = [16, 16], strides = [1, 1]} : vector<22x16xf32> to vector<16x16xf32>
      %c27 = arith.constant 27 : index
      %495 = memref.load %arg2[%c27] : memref<98xf32, #tpu.memory_space<smem>>
      %496 = vector.broadcast %495 : f32 to vector<16x16xf32>
      %497 = arith.mulf %494, %496 : vector<16x16xf32>
      %498 = arith.addf %488, %497 : vector<16x16xf32>
      %499 = vector.extract_strided_slice %463 {offsets = [3, 0], sizes = [16, 16], strides = [1, 1]} : vector<22x16xf32> to vector<16x16xf32>
      %c76 = arith.constant 76 : index
      %500 = memref.load %arg2[%c76] : memref<98xf32, #tpu.memory_space<smem>>
      %501 = vector.broadcast %500 : f32 to vector<16x16xf32>
      %502 = arith.mulf %499, %501 : vector<16x16xf32>
      %503 = arith.addf %493, %502 : vector<16x16xf32>
      %504 = vector.extract_strided_slice %462 {offsets = [4, 0], sizes = [16, 16], strides = [1, 1]} : vector<22x16xf32> to vector<16x16xf32>
      %c34 = arith.constant 34 : index
      %505 = memref.load %arg2[%c34] : memref<98xf32, #tpu.memory_space<smem>>
      %506 = vector.broadcast %505 : f32 to vector<16x16xf32>
      %507 = arith.mulf %504, %506 : vector<16x16xf32>
      %508 = arith.addf %498, %507 : vector<16x16xf32>
      %509 = vector.extract_strided_slice %463 {offsets = [4, 0], sizes = [16, 16], strides = [1, 1]} : vector<22x16xf32> to vector<16x16xf32>
      %c83 = arith.constant 83 : index
      %510 = memref.load %arg2[%c83] : memref<98xf32, #tpu.memory_space<smem>>
      %511 = vector.broadcast %510 : f32 to vector<16x16xf32>
      %512 = arith.mulf %509, %511 : vector<16x16xf32>
      %513 = arith.addf %503, %512 : vector<16x16xf32>
      %514 = vector.extract_strided_slice %462 {offsets = [5, 0], sizes = [16, 16], strides = [1, 1]} : vector<22x16xf32> to vector<16x16xf32>
      %c41 = arith.constant 41 : index
      %515 = memref.load %arg2[%c41] : memref<98xf32, #tpu.memory_space<smem>>
      %516 = vector.broadcast %515 : f32 to vector<16x16xf32>
      %517 = arith.mulf %514, %516 : vector<16x16xf32>
      %518 = arith.addf %508, %517 : vector<16x16xf32>
      %519 = vector.extract_strided_slice %463 {offsets = [5, 0], sizes = [16, 16], strides = [1, 1]} : vector<22x16xf32> to vector<16x16xf32>
      %c90 = arith.constant 90 : index
      %520 = memref.load %arg2[%c90] : memref<98xf32, #tpu.memory_space<smem>>
      %521 = vector.broadcast %520 : f32 to vector<16x16xf32>
      %522 = arith.mulf %519, %521 : vector<16x16xf32>
      %523 = arith.addf %513, %522 : vector<16x16xf32>
      %524 = vector.extract_strided_slice %462 {offsets = [6, 0], sizes = [16, 16], strides = [1, 1]} : vector<22x16xf32> to vector<16x16xf32>
      %c48 = arith.constant 48 : index
      %525 = memref.load %arg2[%c48] : memref<98xf32, #tpu.memory_space<smem>>
      %526 = vector.broadcast %525 : f32 to vector<16x16xf32>
      %527 = arith.mulf %524, %526 : vector<16x16xf32>
      %528 = arith.addf %518, %527 : vector<16x16xf32>
      %529 = vector.extract_strided_slice %463 {offsets = [6, 0], sizes = [16, 16], strides = [1, 1]} : vector<22x16xf32> to vector<16x16xf32>
      %c97 = arith.constant 97 : index
      %530 = memref.load %arg2[%c97] : memref<98xf32, #tpu.memory_space<smem>>
      %531 = vector.broadcast %530 : f32 to vector<16x16xf32>
      %532 = arith.mulf %529, %531 : vector<16x16xf32>
      %533 = arith.addf %523, %532 : vector<16x16xf32>
      %534 = arith.addf %528, %533 : vector<16x16xf32>
      %c0_27 = arith.constant 0 : index
      %535 = memref.load %arg3[%c0_27] : memref<2xf32, #tpu.memory_space<smem>>
      %536 = vector.broadcast %535 : f32 to vector<16x16xf32>
      %537 = arith.mulf %534, %536 : vector<16x16xf32>
      %c1_28 = arith.constant 1 : index
      %538 = memref.load %arg3[%c1_28] : memref<2xf32, #tpu.memory_space<smem>>
      %539 = vector.broadcast %538 : f32 to vector<16x16xf32>
      %540 = arith.addf %537, %539 : vector<16x16xf32>
      %541 = arith.negf %540 : vector<16x16xf32>
      %542 = math.exp %541 : vector<16x16xf32>
      %cst_29 = arith.constant 1.000000e+00 : f32
      %543 = vector.broadcast %cst_29 : f32 to vector<16x16xf32>
      %544 = arith.addf %543, %542 : vector<16x16xf32>
      %545 = arith.divf %543, %544 : vector<16x16xf32>
      %c0_30 = arith.constant 0 : index
      %c0_31 = arith.constant 0 : index
      %c0_32 = arith.constant 0 : index
      %546 = vector.load %arg5[%c0_30, %c0_31, %c0_32] : memref<1x16x16xf32, #tpu.memory_space<vmem>>, vector<1x16x16xf32>
      %547 = vector.shape_cast %546 : vector<1x16x16xf32> to vector<16x16xf32>
      %548 = vector.shape_cast %545 : vector<16x16xf32> to vector<1x16x16xf32>
      tpu.vector_store %arg5[%c0_30, %c0_31, %c0_32], %548 {strides = array<i32>} : memref<1x16x16xf32, #tpu.memory_space<vmem>>, vector<1x16x16xf32>,
    } else {
    }
    return
  }
  func.func @transform_0(%arg0: i32, %arg1: i32) -> i32 {
    %c0_i32 = arith.constant 0 : i32
    %c0_i32_0 = arith.constant 0 : i32
    return %c0_i32 : i32
  }
  func.func @transform_1(%arg0: i32, %arg1: i32) -> i32 {
    %c0_i32 = arith.constant 0 : i32
    %c0_i32_0 = arith.constant 0 : i32
    return %c0_i32 : i32
  }
  func.func @transform_2(%arg0: i32, %arg1: i32) -> (i32, i32, i32, i32) {
    %c0_i32 = arith.constant 0 : i32
    %c0_i32_0 = arith.constant 0 : i32
    %c0_i32_1 = arith.constant 0 : i32
    return %arg0, %arg1, %c0_i32, %c0_i32_0 : i32, i32, i32, i32
  }
  func.func @transform_3(%arg0: i32, %arg1: i32) -> (i32, i32, i32) {
    %c0_i32 = arith.constant 0 : i32
    %c0_i32_0 = arith.constant 0 : i32
    %c0_i32_1 = arith.constant 0 : i32
    return %arg0, %c0_i32, %c0_i32_0 : i32, i32, i32
  }
}

</mosaic_0001>

<llo_original>
// kernel: tpu_custom_call.1
$region0: #{tpu_custom_call.1}
  #allocation0 [shape = 'u32[]', space=smem, size = 0x4, offset = 0x4, fixed_abs, tag = 'smem constant byte address 0x4 - core index']
  #allocation1 [shape = 'u32[144,128]{1,0:T(1,128)}', space=vmem, size = 0x12000, scoped, tag = 'internal scratch']
  #allocation2 [shape = 'f32[16,16]{1,0:T(8,128)}', space=vmem, size = 0x2000, scoped, tag = 'scratch operand']
  #allocation3 [shape = 'f32[16,16]{1,0:T(8,128)}', space=vmem, size = 0x2000, scoped, tag = 'scratch operand']
  %s0 = inlined_call_operand.hbm [shape: f32[98], index: 0, kind: input, shape index: {}]
  %s1 = inlined_call_operand.vmem [shape: f32[2], index: 1, kind: input, shape index: {}]
  %s2 = inlined_call_operand.hbm [shape: f32[2,4,16,16], index: 2, kind: input, shape index: {}]
  %s3 = inlined_call_operand.hbm [shape: f32[2,16,16], index: 3, kind: output, shape index: {}]
  %s4 = sld [smem:[#allocation0]]
  $region65: #{tpu_custom_call.1} parent=0
    _
  %s6 = ssub.s32 1, %s4
  %s7 = scalar_select 0, %s6, %s4
  $region1: #{tpu_custom_call.1} parent=0
    #allocation4 [shape = 'u8[512]{0}', space=smem, size = 0x200, scoped, tag = 'input window, operand 0, single buffered']
    #allocation5 [shape = 's32[2]{0}', space=sflag, size = 0x8, scoped, tag = 'scoped memory for tpu_custom_call.1']
    #allocation6 [shape = 's32[2]{0}', space=sflag, size = 0x8, scoped, tag = 'scoped memory for tpu_custom_call.1']
    #allocation7 [shape = 's32[2]{0}', space=sflag, size = 0x8, scoped, tag = 'scoped memory for tpu_custom_call.1']
    #allocation8 [shape = 's32[2]{0}', space=sflag, size = 0x8, scoped, tag = 'scoped memory for tpu_custom_call.1']
    #allocation9 [shape = 'u8[512]{0}', space=smem, size = 0x200, scoped, tag = 'input window, operand 1, single buffered']
    #allocation10 [shape = 'u8[65536]{0}', space=vmem, size = 0x10000, scoped, tag = 'input window, operand 2']
    #allocation11 [shape = 'u8[16384]{0}', space=vmem, size = 0x4000, scoped, tag = 'output window, operand 0']
    %8 = vsyncpa [#allocation7], 0
    %9 = vsyncpa [#allocation8], 0
    %10 = vsyncpa [#allocation5], 0
    %s11 = scalar_lea.sflag [#allocation5], 1
    %12 = vsyncpa %s11, 0
    %13 = vsyncpa [#allocation6], 0
    %s14 = scalar_lea.sflag [#allocation6], 1
    %15 = vsyncpa %s14, 0
    loop: start=0, step=1, limit=4
    $region2: #{tpu_custom_call.1} parent=1 // loop_pre_header
      _
    $region3: #{tpu_custom_call.1} parent=1 // loop_header
      %s17 = sphi 0, %s21
      %p18 = scmp.ge.s32.totalorder %s17, 4
      %s24 = sphi 0, %s36
      %s25 = sphi 0, %s32
      %s26 = sphi 0, %s24
      %s27 = sphi 0, %s25
      %s28 = sphi 0, %s26
      %s29 = sphi 0, %s27
      %s37 = sphi 0, %s37
      %s39 = sphi 0, %s37
      %s40 = sphi 0, %s39
      %s54 = sphi 0, %s40
      %s58 = sphi 0, %s58
      %s60 = sphi 0, %s58
      %s61 = sphi 0, %s60
      %s75 = sphi 0, %s61
      %s83 = sphi 0, %s85
      %s86 = sphi 0, %s83
      %s87 = sphi 0, %s86
      %s103 = sphi 0, %s87
      %s109 = sphi 0, %s111
      %s112 = sphi 0, %s109
      %s113 = sphi 0, %s112
      %s129 = sphi 0, %s113
    $region4: #{tpu_custom_call.1} parent=1 // loop_header_branch
      %20 = sbr.rel (%p18) target = $region8
    $region5: #{tpu_custom_call.1} parent=1 // loop_body
      %s22 = ssub.s32 %s17, 1
      %s23 = ssub.s32 %s17, 2
      %s30 = sadd.s32 1, %s25
      %p31 = scmp.ge.s32.totalorder %s30, 1
      %s32 = scalar_select %p31, 0, %s30
      %s33 = sadd.s32 1, %s24
      %s34 = scalar_select %p31, %s33, %s24
      %p35 = scmp.ge.s32.totalorder %s34, 2
      %s36 = scalar_select %p35, 0, %s34
      %s38 = sadd.s32 %s37, 1
      %p41 = scmp.eq.s32.totalorder %s17, 1
      %p42 = scmp.ne.s32.totalorder %s37, %s39
      %p43 = scmp.eq.s32.totalorder %s17, 0
      %p44 = por %p42, %p43
      %p45 = scmp.ne.s32.totalorder %s37, %s39
      %p46 = scmp.eq.s32.totalorder %s22, 1
      %p47 = por %p45, %p46
      %p48 = scmp.ne.s32.totalorder %s39, %s40
      %p49 = scmp.eq.s32.totalorder %s22, 0
      %p50 = por %p48, %p49
      %p51 = scmp.ne.s32.totalorder %s39, %s40
      %p52 = scmp.eq.s32.totalorder %s23, 1
      %p53 = por %p51, %p52
      %p55 = scmp.ne.s32.totalorder %s40, %s54
      %p56 = scmp.eq.s32.totalorder %s23, 0
      %p57 = por %p55, %p56
      %s59 = sadd.s32 %s58, 1
      %p62 = scmp.eq.s32.totalorder %s17, 1
      %p63 = scmp.ne.s32.totalorder %s58, %s60
      %p64 = scmp.eq.s32.totalorder %s17, 0
      %p65 = por %p63, %p64
      %p66 = scmp.ne.s32.totalorder %s58, %s60
      %p67 = scmp.eq.s32.totalorder %s22, 1
      %p68 = por %p66, %p67
      %p69 = scmp.ne.s32.totalorder %s60, %s61
      %p70 = scmp.eq.s32.totalorder %s22, 0
      %p71 = por %p69, %p70
      %p72 = scmp.ne.s32.totalorder %s60, %s61
      %p73 = scmp.eq.s32.totalorder %s23, 1
      %p74 = por %p72, %p73
      %p76 = scmp.ne.s32.totalorder %s61, %s75
      %p77 = scmp.eq.s32.totalorder %s23, 0
      %p78 = por %p76, %p77
      %s79 = ssub.s32 %s24, %s36
      %s80 = ssub.s32 %s25, %s32
      %s81 = sor.u32 %s79, %s80
      %p82 = scmp.eq.s32.totalorder %s81, 0
      %s84 = sadd.s32 %s83, 1
      %s85 = scalar_select %p82, %s83, %s84
      %p88 = pneg %p82
      %p89 = scmp.eq.s32.totalorder %s17, 1
      %p90 = por %p88, %p89
      %p91 = scmp.ne.s32.totalorder %s83, %s86
      %p92 = scmp.eq.s32.totalorder %s17, 0
      %p93 = por %p91, %p92
      %p94 = scmp.ne.s32.totalorder %s83, %s86
      %p95 = scmp.eq.s32.totalorder %s22, 1
      %p96 = por %p94, %p95
      %p97 = scmp.ne.s32.totalorder %s86, %s87
      %p98 = scmp.eq.s32.totalorder %s22, 0
      %p99 = por %p97, %p98
      %p100 = scmp.ne.s32.totalorder %s86, %s87
      %p101 = scmp.eq.s32.totalorder %s23, 1
      %p102 = por %p100, %p101
      %p104 = scmp.ne.s32.totalorder %s87, %s103
      %p105 = scmp.eq.s32.totalorder %s23, 0
      %p106 = por %p104, %p105
      %s107 = ssub.s32 %s24, %s36
      %p108 = scmp.eq.s32.totalorder %s107, 0
      %s110 = sadd.s32 %s109, 1
      %s111 = scalar_select %p108, %s109, %s110
      %p114 = pneg %p108
      %p115 = scmp.eq.s32.totalorder %s17, 1
      %p116 = por %p114, %p115
      %p117 = scmp.ne.s32.totalorder %s109, %s112
      %p118 = scmp.eq.s32.totalorder %s17, 0
      %p119 = por %p117, %p118
      %p120 = scmp.ne.s32.totalorder %s109, %s112
      %p121 = scmp.eq.s32.totalorder %s22, 1
      %p122 = por %p120, %p121
      %p123 = scmp.ne.s32.totalorder %s112, %s113
      %p124 = scmp.eq.s32.totalorder %s22, 0
      %p125 = por %p123, %p124
      %p126 = scmp.ne.s32.totalorder %s112, %s113
      %p127 = scmp.eq.s32.totalorder %s23, 1
      %p128 = por %p126, %p127
      %p130 = scmp.ne.s32.totalorder %s113, %s129
      %p131 = scmp.eq.s32.totalorder %s23, 0
      %p132 = por %p130, %p131
      %p133 = scmp.le.s32.totalorder 1, %s17
      %p134 = scmp.lt.s32.totalorder %s17, 3
      %p135 = pnand %p133, %p134
      %p136 = pneg %p135
      // Predicated region
      $region9: #{tpu_custom_call.1} parent=5 // pred_check
        _
      $region10: #{tpu_custom_call.1} parent=5 // pred_check_branch
        %138 = sbr.rel (%p135) target = $region12
      $region11: #{tpu_custom_call.1} parent=5 // pred_region
        %s139 = ssub.s32 %s17, 1
        // Predicated region
        $region13: #{tpu_custom_call.1} parent=11 // pred_check
          %p140 = pneg %p50
        $region14: #{tpu_custom_call.1} parent=11 // pred_check_branch
          %142 = sbr.rel (%p140) target = $region16
        $region15: #{tpu_custom_call.1} parent=11 // pred_region
          %s144 = ssub.s32 16, 16
          %145 = vsyncadd [#allocation7], %s144
          %148 = dma.hbm_to_smem %s0, 16, [#allocation4], [#allocation7]
        $region16: #{tpu_custom_call.1} parent=11 // pred_fallthru
          _
        // Predicated region
        $region17: #{tpu_custom_call.1} parent=11 // pred_check
          %p149 = pneg %p71
        $region18: #{tpu_custom_call.1} parent=11 // pred_check_branch
          %151 = sbr.rel (%p149) target = $region20
        $region19: #{tpu_custom_call.1} parent=11 // pred_region
          %s153 = ssub.s32 16, 16
          %154 = vsyncadd [#allocation8], %s153
          %s156 = sshll.u32 %s1, 4
          %s157 = int_to_ptr.vmem [resolvable:$true] %s156
          %159 = dma.vmem_to_smem %s157, 16, [#allocation9], [#allocation8]
        $region20: #{tpu_custom_call.1} parent=11 // pred_fallthru
          _
      $region12: #{tpu_custom_call.1} parent=5 // pred_fallthru
        _
      %p160 = scmp.lt.s32.totalorder %s17, 2
      // Predicated region
      $region21: #{tpu_custom_call.1} parent=5 // pred_check
        %p161 = pneg %p160
      $region22: #{tpu_custom_call.1} parent=5 // pred_check_branch
        %163 = sbr.rel (%p161) target = $region24
      $region23: #{tpu_custom_call.1} parent=5 // pred_region
        // Predicated region
        $region25: #{tpu_custom_call.1} parent=23 // pred_check
          %p164 = pneg %p93
        $region26: #{tpu_custom_call.1} parent=23 // pred_check_branch
          %166 = sbr.rel (%p164) target = $region28
        $region27: #{tpu_custom_call.1} parent=23 // pred_region
          %s167 = sand.u32 %s83, 1
          %s168 = scalar_lea.sflag [#allocation5], %s167
          %s169 = sand.u32 %s83, 1
          %s170 = smul.addr %s169, 64
          %s171 = scalar_lea.vmem [#allocation10], %s170
          %s172 = smul.u32 4, %s25
          %s174 = ssub.s32 1024, 1024
          %175 = vsyncadd %s168, %s174
          %s176 = smul.addr %s172, 2
          %s177 = smul.addr %s24, 8
          %s178 = sadd.s32 %s176, %s177
          %s179 = smul.addr %s178, 128
          %s180 = scalar_lea.hbm %s2, %s179
          %s181 = sshll.u32 %s171, 4
          %s182 = int_to_ptr.vmem [resolvable:$true] %s181
          %187 = dma.hbm_to_vmem [thread:$0]  %s180, 1024, %s182, %s168, 128, 128, 8
        $region28: #{tpu_custom_call.1} parent=23 // pred_fallthru
          _
      $region24: #{tpu_custom_call.1} parent=5 // pred_fallthru
        _
      %p188 = scmp.le.s32.totalorder 1, %s17
      %p189 = scmp.lt.s32.totalorder %s17, 3
      %p190 = pnand %p188, %p189
      %p191 = pneg %p190
      // Predicated region
      $region29: #{tpu_custom_call.1} parent=5 // pred_check
        _
      $region30: #{tpu_custom_call.1} parent=5 // pred_check_branch
        %193 = sbr.rel (%p190) target = $region32
      $region31: #{tpu_custom_call.1} parent=5 // pred_region
        %s194 = ssub.s32 %s17, 1
        // Predicated region
        $region33: #{tpu_custom_call.1} parent=31 // pred_check
          %p195 = pneg %p50
        $region34: #{tpu_custom_call.1} parent=31 // pred_check_branch
          %197 = sbr.rel (%p195) target = $region36
        $region35: #{tpu_custom_call.1} parent=31 // pred_region
          %198 = dma.done [#allocation7], 16
        $region36: #{tpu_custom_call.1} parent=31 // pred_fallthru
          _
        // Predicated region
        $region37: #{tpu_custom_call.1} parent=31 // pred_check
          %p199 = pneg %p71
        $region38: #{tpu_custom_call.1} parent=31 // pred_check_branch
          %201 = sbr.rel (%p199) target = $region40
        $region39: #{tpu_custom_call.1} parent=31 // pred_region
          %202 = dma.done [#allocation8], 16
        $region40: #{tpu_custom_call.1} parent=31 // pred_fallthru
          _
        %s203 = sand.u32 %s86, 1
        %s204 = scalar_lea.sflag [#allocation5], %s203
        %s205 = sand.u32 %s86, 1
        %s206 = smul.addr %s205, 64
        %s207 = scalar_lea.vmem [#allocation10], %s206
        // Predicated region
        $region41: #{tpu_custom_call.1} parent=31 // pred_check
          %p208 = pneg %p99
        $region42: #{tpu_custom_call.1} parent=31 // pred_check_branch
          %210 = sbr.rel (%p208) target = $region44
        $region43: #{tpu_custom_call.1} parent=31 // pred_region
          %211 = dma.done %s204, 1024
        $region44: #{tpu_custom_call.1} parent=31 // pred_fallthru
          _
        %212 = sfence
        %p213 = pneg %p50
        %p214 = pneg %p47
        %p215 = pneg %p71
        %p216 = pneg %p68
        %s217 = sand.u32 %s86, 1
        %s218 = scalar_lea.sflag [#allocation5], %s217
        %s219 = sand.u32 %s86, 1
        %s220 = smul.addr %s219, 64
        %s221 = scalar_lea.vmem [#allocation10], %s220
        %p222 = pneg %p99
        %p223 = pneg %p96
        %p224 = pneg %p125
        %p225 = pneg %p122
        %s226 = sand.u32 %s112, 1
        %s227 = scalar_lea.sflag [#allocation6], %s226
        %s228 = sand.u32 %s112, 1
        %s229 = smul.addr %s228, 16
        %s230 = scalar_lea.vmem [#allocation11], %s229
        %s231 = smul.u32 4, %s27
        %v232 = vld [vmem:[%s207] sm:$0xff]
        %v233 = vld [vmem:[%s207 + $0x8] sm:$0xff]
        %v234 = vld [vmem:[%s207 + $0x10] sm:$0xff]
        %v235 = vld [vmem:[%s207 + $0x18] sm:$0xff]
        %v236 = vld [vmem:[%s207 + $0x20] sm:$0xff]
        %v237 = vld [vmem:[%s207 + $0x28] sm:$0xff]
        %v238 = vld [vmem:[%s207 + $0x30] sm:$0xff]
        %v239 = vld [vmem:[%s207 + $0x38] sm:$0xff]
        %p240 = scmp.eq.s32.totalorder %s27, 0
        // Predicated region
        $region45: #{tpu_custom_call.1} parent=31 // pred_check
          %p241 = pneg %p240
        $region46: #{tpu_custom_call.1} parent=31 // pred_check_branch
          %243 = sbr.rel (%p241) target = $region48
        $region47: #{tpu_custom_call.1} parent=31 // pred_region
          %vm244 = vcmask 130048
          %245 = vst.msk [vmem:[#allocation2] sm:$0xff] %vm244, -inf
          %246 = vst.msk [vmem:[#allocation2 + $0x8] sm:$0xff] %vm244, -inf
          %247 = vst.msk [vmem:[#allocation3] sm:$0xff] %vm244, 0.0
          %248 = vst.msk [vmem:[#allocation3 + $0x8] sm:$0xff] %vm244, 0.0
        $region48: #{tpu_custom_call.1} parent=31 // pred_fallthru
          _
        %v249 = vld [vmem:[#allocation2] sm:$0xff]
        %v250 = vld [vmem:[#allocation2 + $0x8] sm:$0xff]
        %vm251 = vcmask 130048
        %v252 = vsel %vm251, %v232, -inf
        %v253 = vsel %vm251, %v234, -inf
        %v254 = vsel %vm251, %v236, -inf
        %v255 = vmax.f32 %v252, %v254
        %v256 = vsel %vm251, %v238, -inf
        %v257 = vmax.f32 %v253, %v256
        %v258 = vmax.f32 %v255, %v257
        %v259 = vsel %vm251, %v233, -inf
        %v260 = vsel %vm251, %v235, -inf
        %v261 = vsel %vm251, %v237, -inf
        %v262 = vmax.f32 %v259, %v261
        %v263 = vsel %vm251, %v239, -inf
        %v264 = vmax.f32 %v260, %v263
        %v265 = vmax.f32 %v262, %v264
        %v266 = vmax.f32 %v249, %v258
        %v267 = vmax.f32 %v250, %v265
        %268 = vst.msk [vmem:[#allocation2] sm:$0xff] %vm251, %v266
        %269 = vst.msk [vmem:[#allocation2 + $0x8] sm:$0xff] %vm251, %v267
        %v270 = vld [vmem:[#allocation3] sm:$0xff]
        %v271 = vld [vmem:[#allocation3 + $0x8] sm:$0xff]
        %v272 = vsel %vm251, %v232, 0.0
        %v273 = vsel %vm251, %v234, 0.0
        %v274 = vadd.f32 %v272, %v273
        %v275 = vsel %vm251, %v236, 0.0
        %v276 = vadd.f32 %v274, %v275
        %v277 = vsel %vm251, %v238, 0.0
        %v278 = vadd.f32 %v276, %v277
        %v279 = vsel %vm251, %v233, 0.0
        %v280 = vsel %vm251, %v235, 0.0
        %v281 = vadd.f32 %v279, %v280
        %v282 = vsel %vm251, %v237, 0.0
        %v283 = vadd.f32 %v281, %v282
        %v284 = vsel %vm251, %v239, 0.0
        %v285 = vadd.f32 %v283, %v284
        %v286 = vadd.f32 %v270, %v278
        %v287 = vadd.f32 %v271, %v285
        %288 = vst.msk [vmem:[#allocation3] sm:$0xff] %vm251, %v286
        %289 = vst.msk [vmem:[#allocation3 + $0x8] sm:$0xff] %vm251, %v287
        // Predicated region
        $region49: #{tpu_custom_call.1} parent=31 // pred_check
          %p290 = pneg %p240
        $region50: #{tpu_custom_call.1} parent=31 // pred_check_branch
          %292 = sbr.rel (%p290) target = $region52
        $region51: #{tpu_custom_call.1} parent=31 // pred_region
          %v293 = vld [vmem:[#allocation2] sm:$0xff]
          %v294 = vld [vmem:[#allocation2 + $0x8] sm:$0xff]
          %v295 = vld [vmem:[#allocation3] sm:$0xff]
          %v296 = vld [vmem:[#allocation3 + $0x8] sm:$0xff]
          %v297 = vmul.f32 %v295, 0.25
          %v298 = vmul.f32 %v296, 0.25
          %301 = vrot.lane.b32.xlu0 %v293, 3
          %v302 = vpop.permute.xlu0 %301
          %303 = vrot.lane.b32.xlu0 %v294, 3
          %v304 = vpop.permute.xlu0 %303
          %vm307 = vcmask 23552
          %v308 = vsel %vm307, 0.0, %v302
          %v309 = vsel %vm307, 0.0, %v304
          %vm310 = vcmask 154624
          %v311 = vsel %vm310, %v308, 0.0
          %v312 = vsel %vm310, %v309, 0.0
          %vm315 = vcmask 1042432
          %v316 = vrot.slane %v311, 5
          %v317 = vrot.slane %v312, 5
          %v318 = vsel %vm315, %v316, %v317
          %v322 = vsel %vm315, 0.0, %v316
          %v323 = vsel %vm315, %v317, 0.0
          %326 = vrot.lane.b32.xlu0 %v297, 3
          %v327 = vpop.permute.xlu0 %326
          %328 = vrot.lane.b32.xlu0 %v298, 3
          %v329 = vpop.permute.xlu0 %328
          %v332 = vsel %vm307, 0.0, %v327
          %v333 = vsel %vm307, 0.0, %v329
          %v334 = vsel %vm310, %v332, 0.0
          %v335 = vsel %vm310, %v333, 0.0
          %v338 = vrot.slane %v334, 5
          %v339 = vrot.slane %v335, 5
          %v340 = vsel %vm315, %v338, %v339
          %v344 = vsel %vm315, 0.0, %v338
          %v345 = vsel %vm315, %v339, 0.0
          %s346 = sld [smem:[#allocation4]]
          %v347 = vstv %s346
          %v348 = vmul.f32 %v322, %v347
          %v349 = vmul.f32 %v318, %v347
          %v350 = vadd.f32 %v348, 0.0
          %v351 = vadd.f32 %v349, 0.0
          %s352 = sld [smem:[#allocation4 + $0x31]]
          %v353 = vstv %s352
          %v354 = vmul.f32 %v344, %v353
          %v355 = vmul.f32 %v340, %v353
          %v356 = vadd.f32 %v354, 0.0
          %v357 = vadd.f32 %v355, 0.0
          %s358 = sld [smem:[#allocation4 + $0x7]]
          %v359 = vstv %s358
          %v360 = vmul.f32 %v322, %v359
          %v361 = vmul.f32 %v318, %v359
          %v362 = vmul.f32 %v323, %v359
          %vm366 = vcmask 1046528
          %v367 = vrot.slane %v360, 1
          %v368 = vrot.slane %v361, 1
          %v369 = vsel %vm366, %v367, %v368
          %v370 = vrot.slane %v362, 1
          %v371 = vsel %vm366, %v368, %v370
          %v374 = vadd.f32 %v350, %v369
          %v375 = vadd.f32 %v351, %v371
          %s376 = sld [smem:[#allocation4 + $0x38]]
          %v377 = vstv %s376
          %v378 = vmul.f32 %v344, %v377
          %v379 = vmul.f32 %v340, %v377
          %v380 = vmul.f32 %v345, %v377
          %v384 = vrot.slane %v378, 1
          %v385 = vrot.slane %v379, 1
          %v386 = vsel %vm366, %v384, %v385
          %v387 = vrot.slane %v380, 1
          %v388 = vsel %vm366, %v385, %v387
          %v391 = vadd.f32 %v356, %v386
          %v392 = vadd.f32 %v357, %v388
          %s393 = sld [smem:[#allocation4 + $0xe]]
          %v394 = vstv %s393
          %v395 = vmul.f32 %v322, %v394
          %v396 = vmul.f32 %v318, %v394
          %v397 = vmul.f32 %v323, %v394
          %vm401 = vcmask 1045504
          %v402 = vrot.slane %v395, 2
          %v403 = vrot.slane %v396, 2
          %v404 = vsel %vm401, %v402, %v403
          %v405 = vrot.slane %v397, 2
          %v406 = vsel %vm401, %v403, %v405
          %v409 = vadd.f32 %v374, %v404
          %v410 = vadd.f32 %v375, %v406
          %s411 = sld [smem:[#allocation4 + $0x3f]]
          %v412 = vstv %s411
          %v413 = vmul.f32 %v344, %v412
          %v414 = vmul.f32 %v340, %v412
          %v415 = vmul.f32 %v345, %v412
          %v419 = vrot.slane %v413, 2
          %v420 = vrot.slane %v414, 2
          %v421 = vsel %vm401, %v419, %v420
          %v422 = vrot.slane %v415, 2
          %v423 = vsel %vm401, %v420, %v422
          %v426 = vadd.f32 %v391, %v421
          %v427 = vadd.f32 %v392, %v423
          %s428 = sld [smem:[#allocation4 + $0x15]]
          %v429 = vstv %s428
          %v430 = vmul.f32 %v322, %v429
          %v431 = vmul.f32 %v318, %v429
          %v432 = vmul.f32 %v323, %v429
          %vm436 = vcmask 1044480
          %v437 = vrot.slane %v430, 3
          %v438 = vrot.slane %v431, 3
          %v439 = vsel %vm436, %v437, %v438
          %v440 = vrot.slane %v432, 3
          %v441 = vsel %vm436, %v438, %v440
          %v444 = vadd.f32 %v409, %v439
          %v445 = vadd.f32 %v410, %v441
          %s446 = sld [smem:[#allocation4 + $0x46]]
          %v447 = vstv %s446
          %v448 = vmul.f32 %v344, %v447
          %v449 = vmul.f32 %v340, %v447
          %v450 = vmul.f32 %v345, %v447
          %v454 = vrot.slane %v448, 3
          %v455 = vrot.slane %v449, 3
          %v456 = vsel %vm436, %v454, %v455
          %v457 = vrot.slane %v450, 3
          %v458 = vsel %vm436, %v455, %v457
          %v461 = vadd.f32 %v426, %v456
          %v462 = vadd.f32 %v427, %v458
          %s463 = sld [smem:[#allocation4 + $0x1c]]
          %v464 = vstv %s463
          %v465 = vmul.f32 %v322, %v464
          %v466 = vmul.f32 %v318, %v464
          %v467 = vmul.f32 %v323, %v464
          %vm471 = vcmask 1043456
          %v472 = vrot.slane %v465, 4
          %v473 = vrot.slane %v466, 4
          %v474 = vsel %vm471, %v472, %v473
          %v475 = vrot.slane %v467, 4
          %v476 = vsel %vm471, %v473, %v475
          %v479 = vadd.f32 %v444, %v474
          %v480 = vadd.f32 %v445, %v476
          %s481 = sld [smem:[#allocation4 + $0x4d]]
          %v482 = vstv %s481
          %v483 = vmul.f32 %v344, %v482
          %v484 = vmul.f32 %v340, %v482
          %v485 = vmul.f32 %v345, %v482
          %v489 = vrot.slane %v483, 4
          %v490 = vrot.slane %v484, 4
          %v491 = vsel %vm471, %v489, %v490
          %v492 = vrot.slane %v485, 4
          %v493 = vsel %vm471, %v490, %v492
          %v496 = vadd.f32 %v461, %v491
          %v497 = vadd.f32 %v462, %v493
          %s498 = sld [smem:[#allocation4 + $0x23]]
          %v499 = vstv %s498
          %v500 = vmul.f32 %v322, %v499
          %v501 = vmul.f32 %v318, %v499
          %v502 = vmul.f32 %v323, %v499
          %v506 = vrot.slane %v500, 5
          %v507 = vrot.slane %v501, 5
          %v508 = vsel %vm315, %v506, %v507
          %v509 = vrot.slane %v502, 5
          %v510 = vsel %vm315, %v507, %v509
          %v513 = vadd.f32 %v479, %v508
          %v514 = vadd.f32 %v480, %v510
          %s515 = sld [smem:[#allocation4 + $0x54]]
          %v516 = vstv %s515
          %v517 = vmul.f32 %v344, %v516
          %v518 = vmul.f32 %v340, %v516
          %v519 = vmul.f32 %v345, %v516
          %v523 = vrot.slane %v517, 5
          %v524 = vrot.slane %v518, 5
          %v525 = vsel %vm315, %v523, %v524
          %v526 = vrot.slane %v519, 5
          %v527 = vsel %vm315, %v524, %v526
          %v530 = vadd.f32 %v496, %v525
          %v531 = vadd.f32 %v497, %v527
          %s532 = sld [smem:[#allocation4 + $0x2a]]
          %v533 = vstv %s532
          %v534 = vmul.f32 %v322, %v533
          %v535 = vmul.f32 %v318, %v533
          %v536 = vmul.f32 %v323, %v533
          %vm540 = vcmask 1041408
          %v541 = vrot.slane %v534, 6
          %v542 = vrot.slane %v535, 6
          %v543 = vsel %vm540, %v541, %v542
          %v544 = vrot.slane %v536, 6
          %v545 = vsel %vm540, %v542, %v544
          %v548 = vadd.f32 %v513, %v543
          %v549 = vadd.f32 %v514, %v545
          %s550 = sld [smem:[#allocation4 + $0x5b]]
          %v551 = vstv %s550
          %v552 = vmul.f32 %v344, %v551
          %v553 = vmul.f32 %v340, %v551
          %v554 = vmul.f32 %v345, %v551
          %v558 = vrot.slane %v552, 6
          %v559 = vrot.slane %v553, 6
          %v560 = vsel %vm540, %v558, %v559
          %v561 = vrot.slane %v554, 6
          %v562 = vsel %vm540, %v559, %v561
          %v565 = vadd.f32 %v530, %v560
          %v566 = vadd.f32 %v531, %v562
          %s567 = sld [smem:[#allocation4 + $0x1]]
          %v568 = vstv %s567
          %v569 = vmul.f32 %v322, %v568
          %v570 = vmul.f32 %v318, %v568
          %573 = vrot.lane.b32.xlu0 %v569, 127
          %v574 = vpop.permute.xlu0 %573
          %575 = vrot.lane.b32.xlu0 %v570, 127
          %v576 = vpop.permute.xlu0 %575
          %v579 = vadd.f32 %v548, %v574
          %v580 = vadd.f32 %v549, %v576
          %s581 = sld [smem:[#allocation4 + $0x32]]
          %v582 = vstv %s581
          %v583 = vmul.f32 %v344, %v582
          %v584 = vmul.f32 %v340, %v582
          %587 = vrot.lane.b32.xlu0 %v583, 127
          %v588 = vpop.permute.xlu0 %587
          %589 = vrot.lane.b32.xlu0 %v584, 127
          %v590 = vpop.permute.xlu0 %589
          %v593 = vadd.f32 %v565, %v588
          %v594 = vadd.f32 %v566, %v590
          %s595 = sld [smem:[#allocation4 + $0x8]]
          %v596 = vstv %s595
          %v597 = vmul.f32 %v322, %v596
          %v598 = vmul.f32 %v318, %v596
          %v599 = vmul.f32 %v323, %v596
          %v603 = vrot.slane %v597, 1
          %v604 = vrot.slane %v598, 1
          %v605 = vsel %vm366, %v603, %v604
          %v606 = vrot.slane %v599, 1
          %v607 = vsel %vm366, %v604, %v606
          %608 = vrot.lane.b32.xlu0 %v605, 127
          %v609 = vpop.permute.xlu0 %608
          %610 = vrot.lane.b32.xlu0 %v607, 127
          %v611 = vpop.permute.xlu0 %610
          %v614 = vadd.f32 %v579, %v609
          %v615 = vadd.f32 %v580, %v611
          %s616 = sld [smem:[#allocation4 + $0x39]]
          %v617 = vstv %s616
          %v618 = vmul.f32 %v344, %v617
          %v619 = vmul.f32 %v340, %v617
          %v620 = vmul.f32 %v345, %v617
          %v624 = vrot.slane %v618, 1
          %v625 = vrot.slane %v619, 1
          %v626 = vsel %vm366, %v624, %v625
          %v627 = vrot.slane %v620, 1
          %v628 = vsel %vm366, %v625, %v627
          %629 = vrot.lane.b32.xlu0 %v626, 127
          %v630 = vpop.permute.xlu0 %629
          %631 = vrot.lane.b32.xlu0 %v628, 127
          %v632 = vpop.permute.xlu0 %631
          %v635 = vadd.f32 %v593, %v630
          %v636 = vadd.f32 %v594, %v632
          %s637 = sld [smem:[#allocation4 + $0xf]]
          %v638 = vstv %s637
          %v639 = vmul.f32 %v322, %v638
          %v640 = vmul.f32 %v318, %v638
          %v641 = vmul.f32 %v323, %v638
          %v645 = vrot.slane %v639, 2
          %v646 = vrot.slane %v640, 2
          %v647 = vsel %vm401, %v645, %v646
          %v648 = vrot.slane %v641, 2
          %v649 = vsel %vm401, %v646, %v648
          %650 = vrot.lane.b32.xlu0 %v647, 127
          %v651 = vpop.permute.xlu0 %650
          %652 = vrot.lane.b32.xlu0 %v649, 127
          %v653 = vpop.permute.xlu0 %652
          %v656 = vadd.f32 %v614, %v651
          %v657 = vadd.f32 %v615, %v653
          %s658 = sld [smem:[#allocation4 + $0x40]]
          %v659 = vstv %s658
          %v660 = vmul.f32 %v344, %v659
          %v661 = vmul.f32 %v340, %v659
          %v662 = vmul.f32 %v345, %v659
          %v666 = vrot.slane %v660, 2
          %v667 = vrot.slane %v661, 2
          %v668 = vsel %vm401, %v666, %v667
          %v669 = vrot.slane %v662, 2
          %v670 = vsel %vm401, %v667, %v669
          %671 = vrot.lane.b32.xlu0 %v668, 127
          %v672 = vpop.permute.xlu0 %671
          %673 = vrot.lane.b32.xlu0 %v670, 127
          %v674 = vpop.permute.xlu0 %673
          %v677 = vadd.f32 %v635, %v672
          %v678 = vadd.f32 %v636, %v674
          %s679 = sld [smem:[#allocation4 + $0x16]]
          %v680 = vstv %s679
          %v681 = vmul.f32 %v322, %v680
          %v682 = vmul.f32 %v318, %v680
          %v683 = vmul.f32 %v323, %v680
          %v687 = vrot.slane %v681, 3
          %v688 = vrot.slane %v682, 3
          %v689 = vsel %vm436, %v687, %v688
          %v690 = vrot.slane %v683, 3
          %v691 = vsel %vm436, %v688, %v690
          %692 = vrot.lane.b32.xlu0 %v689, 127
          %v693 = vpop.permute.xlu0 %692
          %694 = vrot.lane.b32.xlu0 %v691, 127
          %v695 = vpop.permute.xlu0 %694
          %v698 = vadd.f32 %v656, %v693
          %v699 = vadd.f32 %v657, %v695
          %s700 = sld [smem:[#allocation4 + $0x47]]
          %v701 = vstv %s700
          %v702 = vmul.f32 %v344, %v701
          %v703 = vmul.f32 %v340, %v701
          %v704 = vmul.f32 %v345, %v701
          %v708 = vrot.slane %v702, 3
          %v709 = vrot.slane %v703, 3
          %v710 = vsel %vm436, %v708, %v709
          %v711 = vrot.slane %v704, 3
          %v712 = vsel %vm436, %v709, %v711
          %713 = vrot.lane.b32.xlu0 %v710, 127
          %v714 = vpop.permute.xlu0 %713
          %715 = vrot.lane.b32.xlu0 %v712, 127
          %v716 = vpop.permute.xlu0 %715
          %v719 = vadd.f32 %v677, %v714
          %v720 = vadd.f32 %v678, %v716
          %s721 = sld [smem:[#allocation4 + $0x1d]]
          %v722 = vstv %s721
          %v723 = vmul.f32 %v322, %v722
          %v724 = vmul.f32 %v318, %v722
          %v725 = vmul.f32 %v323, %v722
          %v729 = vrot.slane %v723, 4
          %v730 = vrot.slane %v724, 4
          %v731 = vsel %vm471, %v729, %v730
          %v732 = vrot.slane %v725, 4
          %v733 = vsel %vm471, %v730, %v732
          %734 = vrot.lane.b32.xlu0 %v731, 127
          %v735 = vpop.permute.xlu0 %734
          %736 = vrot.lane.b32.xlu0 %v733, 127
          %v737 = vpop.permute.xlu0 %736
          %v740 = vadd.f32 %v698, %v735
          %v741 = vadd.f32 %v699, %v737
          %s742 = sld [smem:[#allocation4 + $0x4e]]
          %v743 = vstv %s742
          %v744 = vmul.f32 %v344, %v743
          %v745 = vmul.f32 %v340, %v743
          %v746 = vmul.f32 %v345, %v743
          %v750 = vrot.slane %v744, 4
          %v751 = vrot.slane %v745, 4
          %v752 = vsel %vm471, %v750, %v751
          %v753 = vrot.slane %v746, 4
          %v754 = vsel %vm471, %v751, %v753
          %755 = vrot.lane.b32.xlu0 %v752, 127
          %v756 = vpop.permute.xlu0 %755
          %757 = vrot.lane.b32.xlu0 %v754, 127
          %v758 = vpop.permute.xlu0 %757
          %v761 = vadd.f32 %v719, %v756
          %v762 = vadd.f32 %v720, %v758
          %s763 = sld [smem:[#allocation4 + $0x24]]
          %v764 = vstv %s763
          %v765 = vmul.f32 %v322, %v764
          %v766 = vmul.f32 %v318, %v764
          %v767 = vmul.f32 %v323, %v764
          %v771 = vrot.slane %v765, 5
          %v772 = vrot.slane %v766, 5
          %v773 = vsel %vm315, %v771, %v772
          %v774 = vrot.slane %v767, 5
          %v775 = vsel %vm315, %v772, %v774
          %776 = vrot.lane.b32.xlu0 %v773, 127
          %v777 = vpop.permute.xlu0 %776
          %778 = vrot.lane.b32.xlu0 %v775, 127
          %v779 = vpop.permute.xlu0 %778
          %v782 = vadd.f32 %v740, %v777
          %v783 = vadd.f32 %v741, %v779
          %s784 = sld [smem:[#allocation4 + $0x55]]
          %v785 = vstv %s784
          %v786 = vmul.f32 %v344, %v785
          %v787 = vmul.f32 %v340, %v785
          %v788 = vmul.f32 %v345, %v785
          %v792 = vrot.slane %v786, 5
          %v793 = vrot.slane %v787, 5
          %v794 = vsel %vm315, %v792, %v793
          %v795 = vrot.slane %v788, 5
          %v796 = vsel %vm315, %v793, %v795
          %797 = vrot.lane.b32.xlu0 %v794, 127
          %v798 = vpop.permute.xlu0 %797
          %799 = vrot.lane.b32.xlu0 %v796, 127
          %v800 = vpop.permute.xlu0 %799
          %v803 = vadd.f32 %v761, %v798
          %v804 = vadd.f32 %v762, %v800
          %s805 = sld [smem:[#allocation4 + $0x2b]]
          %v806 = vstv %s805
          %v807 = vmul.f32 %v322, %v806
          %v808 = vmul.f32 %v318, %v806
          %v809 = vmul.f32 %v323, %v806
          %v813 = vrot.slane %v807, 6
          %v814 = vrot.slane %v808, 6
          %v815 = vsel %vm540, %v813, %v814
          %v816 = vrot.slane %v809, 6
          %v817 = vsel %vm540, %v814, %v816
          %818 = vrot.lane.b32.xlu0 %v815, 127
          %v819 = vpop.permute.xlu0 %818
          %820 = vrot.lane.b32.xlu0 %v817, 127
          %v821 = vpop.permute.xlu0 %820
          %v824 = vadd.f32 %v782, %v819
          %v825 = vadd.f32 %v783, %v821
          %s826 = sld [smem:[#allocation4 + $0x5c]]
          %v827 = vstv %s826
          %v828 = vmul.f32 %v344, %v827
          %v829 = vmul.f32 %v340, %v827
          %v830 = vmul.f32 %v345, %v827
          %v834 = vrot.slane %v828, 6
          %v835 = vrot.slane %v829, 6
          %v836 = vsel %vm540, %v834, %v835
          %v837 = vrot.slane %v830, 6
          %v838 = vsel %vm540, %v835, %v837
          %839 = vrot.lane.b32.xlu0 %v836, 127
          %v840 = vpop.permute.xlu0 %839
          %841 = vrot.lane.b32.xlu0 %v838, 127
          %v842 = vpop.permute.xlu0 %841
          %v845 = vadd.f32 %v803, %v840
          %v846 = vadd.f32 %v804, %v842
          %s847 = sld [smem:[#allocation4 + $0x2]]
          %v848 = vstv %s847
          %v849 = vmul.f32 %v322, %v848
          %v850 = vmul.f32 %v318, %v848
          %853 = vrot.lane.b32.xlu0 %v849, 126
          %v854 = vpop.permute.xlu0 %853
          %855 = vrot.lane.b32.xlu0 %v850, 126
          %v856 = vpop.permute.xlu0 %855
          %v859 = vadd.f32 %v824, %v854
          %v860 = vadd.f32 %v825, %v856
          %s861 = sld [smem:[#allocation4 + $0x33]]
          %v862 = vstv %s861
          %v863 = vmul.f32 %v344, %v862
          %v864 = vmul.f32 %v340, %v862
          %867 = vrot.lane.b32.xlu0 %v863, 126
          %v868 = vpop.permute.xlu0 %867
          %869 = vrot.lane.b32.xlu0 %v864, 126
          %v870 = vpop.permute.xlu0 %869
          %v873 = vadd.f32 %v845, %v868
          %v874 = vadd.f32 %v846, %v870
          %s875 = sld [smem:[#allocation4 + $0x9]]
          %v876 = vstv %s875
          %v877 = vmul.f32 %v322, %v876
          %v878 = vmul.f32 %v318, %v876
          %v879 = vmul.f32 %v323, %v876
          %v883 = vrot.slane %v877, 1
          %v884 = vrot.slane %v878, 1
          %v885 = vsel %vm366, %v883, %v884
          %v886 = vrot.slane %v879, 1
          %v887 = vsel %vm366, %v884, %v886
          %888 = vrot.lane.b32.xlu0 %v885, 126
          %v889 = vpop.permute.xlu0 %888
          %890 = vrot.lane.b32.xlu0 %v887, 126
          %v891 = vpop.permute.xlu0 %890
          %v894 = vadd.f32 %v859, %v889
          %v895 = vadd.f32 %v860, %v891
          %s896 = sld [smem:[#allocation4 + $0x3a]]
          %v897 = vstv %s896
          %v898 = vmul.f32 %v344, %v897
          %v899 = vmul.f32 %v340, %v897
          %v900 = vmul.f32 %v345, %v897
          %v904 = vrot.slane %v898, 1
          %v905 = vrot.slane %v899, 1
          %v906 = vsel %vm366, %v904, %v905
          %v907 = vrot.slane %v900, 1
          %v908 = vsel %vm366, %v905, %v907
          %909 = vrot.lane.b32.xlu0 %v906, 126
          %v910 = vpop.permute.xlu0 %909
          %911 = vrot.lane.b32.xlu0 %v908, 126
          %v912 = vpop.permute.xlu0 %911
          %v915 = vadd.f32 %v873, %v910
          %v916 = vadd.f32 %v874, %v912
          %s917 = sld [smem:[#allocation4 + $0x10]]
          %v918 = vstv %s917
          %v919 = vmul.f32 %v322, %v918
          %v920 = vmul.f32 %v318, %v918
          %v921 = vmul.f32 %v323, %v918
          %v925 = vrot.slane %v919, 2
          %v926 = vrot.slane %v920, 2
          %v927 = vsel %vm401, %v925, %v926
          %v928 = vrot.slane %v921, 2
          %v929 = vsel %vm401, %v926, %v928
          %930 = vrot.lane.b32.xlu0 %v927, 126
          %v931 = vpop.permute.xlu0 %930
          %932 = vrot.lane.b32.xlu0 %v929, 126
          %v933 = vpop.permute.xlu0 %932
          %v936 = vadd.f32 %v894, %v931
          %v937 = vadd.f32 %v895, %v933
          %s938 = sld [smem:[#allocation4 + $0x41]]
          %v939 = vstv %s938
          %v940 = vmul.f32 %v344, %v939
          %v941 = vmul.f32 %v340, %v939
          %v942 = vmul.f32 %v345, %v939
          %v946 = vrot.slane %v940, 2
          %v947 = vrot.slane %v941, 2
          %v948 = vsel %vm401, %v946, %v947
          %v949 = vrot.slane %v942, 2
          %v950 = vsel %vm401, %v947, %v949
          %951 = vrot.lane.b32.xlu0 %v948, 126
          %v952 = vpop.permute.xlu0 %951
          %953 = vrot.lane.b32.xlu0 %v950, 126
          %v954 = vpop.permute.xlu0 %953
          %v957 = vadd.f32 %v915, %v952
          %v958 = vadd.f32 %v916, %v954
          %s959 = sld [smem:[#allocation4 + $0x17]]
          %v960 = vstv %s959
          %v961 = vmul.f32 %v322, %v960
          %v962 = vmul.f32 %v318, %v960
          %v963 = vmul.f32 %v323, %v960
          %v967 = vrot.slane %v961, 3
          %v968 = vrot.slane %v962, 3
          %v969 = vsel %vm436, %v967, %v968
          %v970 = vrot.slane %v963, 3
          %v971 = vsel %vm436, %v968, %v970
          %972 = vrot.lane.b32.xlu0 %v969, 126
          %v973 = vpop.permute.xlu0 %972
          %974 = vrot.lane.b32.xlu0 %v971, 126
          %v975 = vpop.permute.xlu0 %974
          %v978 = vadd.f32 %v936, %v973
          %v979 = vadd.f32 %v937, %v975
          %s980 = sld [smem:[#allocation4 + $0x48]]
          %v981 = vstv %s980
          %v982 = vmul.f32 %v344, %v981
          %v983 = vmul.f32 %v340, %v981
          %v984 = vmul.f32 %v345, %v981
          %v988 = vrot.slane %v982, 3
          %v989 = vrot.slane %v983, 3
          %v990 = vsel %vm436, %v988, %v989
          %v991 = vrot.slane %v984, 3
          %v992 = vsel %vm436, %v989, %v991
          %993 = vrot.lane.b32.xlu0 %v990, 126
          %v994 = vpop.permute.xlu0 %993
          %995 = vrot.lane.b32.xlu0 %v992, 126
          %v996 = vpop.permute.xlu0 %995
          %v999 = vadd.f32 %v957, %v994
          %v1000 = vadd.f32 %v958, %v996
          %s1001 = sld [smem:[#allocation4 + $0x1e]]
          %v1002 = vstv %s1001
          %v1003 = vmul.f32 %v322, %v1002
          %v1004 = vmul.f32 %v318, %v1002
          %v1005 = vmul.f32 %v323, %v1002
          %v1009 = vrot.slane %v1003, 4
          %v1010 = vrot.slane %v1004, 4
          %v1011 = vsel %vm471, %v1009, %v1010
          %v1012 = vrot.slane %v1005, 4
          %v1013 = vsel %vm471, %v1010, %v1012
          %1014 = vrot.lane.b32.xlu0 %v1011, 126
          %v1015 = vpop.permute.xlu0 %1014
          %1016 = vrot.lane.b32.xlu0 %v1013, 126
          %v1017 = vpop.permute.xlu0 %1016
          %v1020 = vadd.f32 %v978, %v1015
          %v1021 = vadd.f32 %v979, %v1017
          %s1022 = sld [smem:[#allocation4 + $0x4f]]
          %v1023 = vstv %s1022
          %v1024 = vmul.f32 %v344, %v1023
          %v1025 = vmul.f32 %v340, %v1023
          %v1026 = vmul.f32 %v345, %v1023
          %v1030 = vrot.slane %v1024, 4
          %v1031 = vrot.slane %v1025, 4
          %v1032 = vsel %vm471, %v1030, %v1031
          %v1033 = vrot.slane %v1026, 4
          %v1034 = vsel %vm471, %v1031, %v1033
          %1035 = vrot.lane.b32.xlu0 %v1032, 126
          %v1036 = vpop.permute.xlu0 %1035
          %1037 = vrot.lane.b32.xlu0 %v1034, 126
          %v1038 = vpop.permute.xlu0 %1037
          %v1041 = vadd.f32 %v999, %v1036
          %v1042 = vadd.f32 %v1000, %v1038
          %s1043 = sld [smem:[#allocation4 + $0x25]]
          %v1044 = vstv %s1043
          %v1045 = vmul.f32 %v322, %v1044
          %v1046 = vmul.f32 %v318, %v1044
          %v1047 = vmul.f32 %v323, %v1044
          %v1051 = vrot.slane %v1045, 5
          %v1052 = vrot.slane %v1046, 5
          %v1053 = vsel %vm315, %v1051, %v1052
          %v1054 = vrot.slane %v1047, 5
          %v1055 = vsel %vm315, %v1052, %v1054
          %1056 = vrot.lane.b32.xlu0 %v1053, 126
          %v1057 = vpop.permute.xlu0 %1056
          %1058 = vrot.lane.b32.xlu0 %v1055, 126
          %v1059 = vpop.permute.xlu0 %1058
          %v1062 = vadd.f32 %v1020, %v1057
          %v1063 = vadd.f32 %v1021, %v1059
          %s1064 = sld [smem:[#allocation4 + $0x56]]
          %v1065 = vstv %s1064
          %v1066 = vmul.f32 %v344, %v1065
          %v1067 = vmul.f32 %v340, %v1065
          %v1068 = vmul.f32 %v345, %v1065
          %v1072 = vrot.slane %v1066, 5
          %v1073 = vrot.slane %v1067, 5
          %v1074 = vsel %vm315, %v1072, %v1073
          %v1075 = vrot.slane %v1068, 5
          %v1076 = vsel %vm315, %v1073, %v1075
          %1077 = vrot.lane.b32.xlu0 %v1074, 126
          %v1078 = vpop.permute.xlu0 %1077
          %1079 = vrot.lane.b32.xlu0 %v1076, 126
          %v1080 = vpop.permute.xlu0 %1079
          %v1083 = vadd.f32 %v1041, %v1078
          %v1084 = vadd.f32 %v1042, %v1080
          %s1085 = sld [smem:[#allocation4 + $0x2c]]
          %v1086 = vstv %s1085
          %v1087 = vmul.f32 %v322, %v1086
          %v1088 = vmul.f32 %v318, %v1086
          %v1089 = vmul.f32 %v323, %v1086
          %v1093 = vrot.slane %v1087, 6
          %v1094 = vrot.slane %v1088, 6
          %v1095 = vsel %vm540, %v1093, %v1094
          %v1096 = vrot.slane %v1089, 6
          %v1097 = vsel %vm540, %v1094, %v1096
          %1098 = vrot.lane.b32.xlu0 %v1095, 126
          %v1099 = vpop.permute.xlu0 %1098
          %1100 = vrot.lane.b32.xlu0 %v1097, 126
          %v1101 = vpop.permute.xlu0 %1100
          %v1104 = vadd.f32 %v1062, %v1099
          %v1105 = vadd.f32 %v1063, %v1101
          %s1106 = sld [smem:[#allocation4 + $0x5d]]
          %v1107 = vstv %s1106
          %v1108 = vmul.f32 %v344, %v1107
          %v1109 = vmul.f32 %v340, %v1107
          %v1110 = vmul.f32 %v345, %v1107
          %v1114 = vrot.slane %v1108, 6
          %v1115 = vrot.slane %v1109, 6
          %v1116 = vsel %vm540, %v1114, %v1115
          %v1117 = vrot.slane %v1110, 6
          %v1118 = vsel %vm540, %v1115, %v1117
          %1119 = vrot.lane.b32.xlu0 %v1116, 126
          %v1120 = vpop.permute.xlu0 %1119
          %1121 = vrot.lane.b32.xlu0 %v1118, 126
          %v1122 = vpop.permute.xlu0 %1121
          %v1125 = vadd.f32 %v1083, %v1120
          %v1126 = vadd.f32 %v1084, %v1122
          %s1127 = sld [smem:[#allocation4 + $0x3]]
          %v1128 = vstv %s1127
          %v1129 = vmul.f32 %v322, %v1128
          %v1130 = vmul.f32 %v318, %v1128
          %1133 = vrot.lane.b32.xlu0 %v1129, 125
          %v1134 = vpop.permute.xlu0 %1133
          %1135 = vrot.lane.b32.xlu0 %v1130, 125
          %v1136 = vpop.permute.xlu0 %1135
          %v1139 = vadd.f32 %v1104, %v1134
          %v1140 = vadd.f32 %v1105, %v1136
          %s1141 = sld [smem:[#allocation4 + $0x34]]
          %v1142 = vstv %s1141
          %v1143 = vmul.f32 %v344, %v1142
          %v1144 = vmul.f32 %v340, %v1142
          %1147 = vrot.lane.b32.xlu0 %v1143, 125
          %v1148 = vpop.permute.xlu0 %1147
          %1149 = vrot.lane.b32.xlu0 %v1144, 125
          %v1150 = vpop.permute.xlu0 %1149
          %v1153 = vadd.f32 %v1125, %v1148
          %v1154 = vadd.f32 %v1126, %v1150
          %s1155 = sld [smem:[#allocation4 + $0xa]]
          %v1156 = vstv %s1155
          %v1157 = vmul.f32 %v322, %v1156
          %v1158 = vmul.f32 %v318, %v1156
          %v1159 = vmul.f32 %v323, %v1156
          %v1163 = vrot.slane %v1157, 1
          %v1164 = vrot.slane %v1158, 1
          %v1165 = vsel %vm366, %v1163, %v1164
          %v1166 = vrot.slane %v1159, 1
          %v1167 = vsel %vm366, %v1164, %v1166
          %1168 = vrot.lane.b32.xlu0 %v1165, 125
          %v1169 = vpop.permute.xlu0 %1168
          %1170 = vrot.lane.b32.xlu0 %v1167, 125
          %v1171 = vpop.permute.xlu0 %1170
          %v1174 = vadd.f32 %v1139, %v1169
          %v1175 = vadd.f32 %v1140, %v1171
          %s1176 = sld [smem:[#allocation4 + $0x3b]]
          %v1177 = vstv %s1176
          %v1178 = vmul.f32 %v344, %v1177
          %v1179 = vmul.f32 %v340, %v1177
          %v1180 = vmul.f32 %v345, %v1177
          %v1184 = vrot.slane %v1178, 1
          %v1185 = vrot.slane %v1179, 1
          %v1186 = vsel %vm366, %v1184, %v1185
          %v1187 = vrot.slane %v1180, 1
          %v1188 = vsel %vm366, %v1185, %v1187
          %1189 = vrot.lane.b32.xlu0 %v1186, 125
          %v1190 = vpop.permute.xlu0 %1189
          %1191 = vrot.lane.b32.xlu0 %v1188, 125
          %v1192 = vpop.permute.xlu0 %1191
          %v1195 = vadd.f32 %v1153, %v1190
          %v1196 = vadd.f32 %v1154, %v1192
          %s1197 = sld [smem:[#allocation4 + $0x11]]
          %v1198 = vstv %s1197
          %v1199 = vmul.f32 %v322, %v1198
          %v1200 = vmul.f32 %v318, %v1198
          %v1201 = vmul.f32 %v323, %v1198
          %v1205 = vrot.slane %v1199, 2
          %v1206 = vrot.slane %v1200, 2
          %v1207 = vsel %vm401, %v1205, %v1206
          %v1208 = vrot.slane %v1201, 2
          %v1209 = vsel %vm401, %v1206, %v1208
          %1210 = vrot.lane.b32.xlu0 %v1207, 125
          %v1211 = vpop.permute.xlu0 %1210
          %1212 = vrot.lane.b32.xlu0 %v1209, 125
          %v1213 = vpop.permute.xlu0 %1212
          %v1216 = vadd.f32 %v1174, %v1211
          %v1217 = vadd.f32 %v1175, %v1213
          %s1218 = sld [smem:[#allocation4 + $0x42]]
          %v1219 = vstv %s1218
          %v1220 = vmul.f32 %v344, %v1219
          %v1221 = vmul.f32 %v340, %v1219
          %v1222 = vmul.f32 %v345, %v1219
          %v1226 = vrot.slane %v1220, 2
          %v1227 = vrot.slane %v1221, 2
          %v1228 = vsel %vm401, %v1226, %v1227
          %v1229 = vrot.slane %v1222, 2
          %v1230 = vsel %vm401, %v1227, %v1229
          %1231 = vrot.lane.b32.xlu0 %v1228, 125
          %v1232 = vpop.permute.xlu0 %1231
          %1233 = vrot.lane.b32.xlu0 %v1230, 125
          %v1234 = vpop.permute.xlu0 %1233
          %v1237 = vadd.f32 %v1195, %v1232
          %v1238 = vadd.f32 %v1196, %v1234
          %s1239 = sld [smem:[#allocation4 + $0x18]]
          %v1240 = vstv %s1239
          %v1241 = vmul.f32 %v322, %v1240
          %v1242 = vmul.f32 %v318, %v1240
          %v1243 = vmul.f32 %v323, %v1240
          %v1247 = vrot.slane %v1241, 3
          %v1248 = vrot.slane %v1242, 3
          %v1249 = vsel %vm436, %v1247, %v1248
          %v1250 = vrot.slane %v1243, 3
          %v1251 = vsel %vm436, %v1248, %v1250
          %1252 = vrot.lane.b32.xlu0 %v1249, 125
          %v1253 = vpop.permute.xlu0 %1252
          %1254 = vrot.lane.b32.xlu0 %v1251, 125
          %v1255 = vpop.permute.xlu0 %1254
          %v1258 = vadd.f32 %v1216, %v1253
          %v1259 = vadd.f32 %v1217, %v1255
          %s1260 = sld [smem:[#allocation4 + $0x49]]
          %v1261 = vstv %s1260
          %v1262 = vmul.f32 %v344, %v1261
          %v1263 = vmul.f32 %v340, %v1261
          %v1264 = vmul.f32 %v345, %v1261
          %v1268 = vrot.slane %v1262, 3
          %v1269 = vrot.slane %v1263, 3
          %v1270 = vsel %vm436, %v1268, %v1269
          %v1271 = vrot.slane %v1264, 3
          %v1272 = vsel %vm436, %v1269, %v1271
          %1273 = vrot.lane.b32.xlu0 %v1270, 125
          %v1274 = vpop.permute.xlu0 %1273
          %1275 = vrot.lane.b32.xlu0 %v1272, 125
          %v1276 = vpop.permute.xlu0 %1275
          %v1279 = vadd.f32 %v1237, %v1274
          %v1280 = vadd.f32 %v1238, %v1276
          %s1281 = sld [smem:[#allocation4 + $0x1f]]
          %v1282 = vstv %s1281
          %v1283 = vmul.f32 %v322, %v1282
          %v1284 = vmul.f32 %v318, %v1282
          %v1285 = vmul.f32 %v323, %v1282
          %v1289 = vrot.slane %v1283, 4
          %v1290 = vrot.slane %v1284, 4
          %v1291 = vsel %vm471, %v1289, %v1290
          %v1292 = vrot.slane %v1285, 4
          %v1293 = vsel %vm471, %v1290, %v1292
          %1294 = vrot.lane.b32.xlu0 %v1291, 125
          %v1295 = vpop.permute.xlu0 %1294
          %1296 = vrot.lane.b32.xlu0 %v1293, 125
          %v1297 = vpop.permute.xlu0 %1296
          %v1300 = vadd.f32 %v1258, %v1295
          %v1301 = vadd.f32 %v1259, %v1297
          %s1302 = sld [smem:[#allocation4 + $0x50]]
          %v1303 = vstv %s1302
          %v1304 = vmul.f32 %v344, %v1303
          %v1305 = vmul.f32 %v340, %v1303
          %v1306 = vmul.f32 %v345, %v1303
          %v1310 = vrot.slane %v1304, 4
          %v1311 = vrot.slane %v1305, 4
          %v1312 = vsel %vm471, %v1310, %v1311
          %v1313 = vrot.slane %v1306, 4
          %v1314 = vsel %vm471, %v1311, %v1313
          %1315 = vrot.lane.b32.xlu0 %v1312, 125
          %v1316 = vpop.permute.xlu0 %1315
          %1317 = vrot.lane.b32.xlu0 %v1314, 125
          %v1318 = vpop.permute.xlu0 %1317
          %v1321 = vadd.f32 %v1279, %v1316
          %v1322 = vadd.f32 %v1280, %v1318
          %s1323 = sld [smem:[#allocation4 + $0x26]]
          %v1324 = vstv %s1323
          %v1325 = vmul.f32 %v322, %v1324
          %v1326 = vmul.f32 %v318, %v1324
          %v1327 = vmul.f32 %v323, %v1324
          %v1331 = vrot.slane %v1325, 5
          %v1332 = vrot.slane %v1326, 5
          %v1333 = vsel %vm315, %v1331, %v1332
          %v1334 = vrot.slane %v1327, 5
          %v1335 = vsel %vm315, %v1332, %v1334
          %1336 = vrot.lane.b32.xlu0 %v1333, 125
          %v1337 = vpop.permute.xlu0 %1336
          %1338 = vrot.lane.b32.xlu0 %v1335, 125
          %v1339 = vpop.permute.xlu0 %1338
          %v1342 = vadd.f32 %v1300, %v1337
          %v1343 = vadd.f32 %v1301, %v1339
          %s1344 = sld [smem:[#allocation4 + $0x57]]
          %v1345 = vstv %s1344
          %v1346 = vmul.f32 %v344, %v1345
          %v1347 = vmul.f32 %v340, %v1345
          %v1348 = vmul.f32 %v345, %v1345
          %v1352 = vrot.slane %v1346, 5
          %v1353 = vrot.slane %v1347, 5
          %v1354 = vsel %vm315, %v1352, %v1353
          %v1355 = vrot.slane %v1348, 5
          %v1356 = vsel %vm315, %v1353, %v1355
          %1357 = vrot.lane.b32.xlu0 %v1354, 125
          %v1358 = vpop.permute.xlu0 %1357
          %1359 = vrot.lane.b32.xlu0 %v1356, 125
          %v1360 = vpop.permute.xlu0 %1359
          %v1363 = vadd.f32 %v1321, %v1358
          %v1364 = vadd.f32 %v1322, %v1360
          %s1365 = sld [smem:[#allocation4 + $0x2d]]
          %v1366 = vstv %s1365
          %v1367 = vmul.f32 %v322, %v1366
          %v1368 = vmul.f32 %v318, %v1366
          %v1369 = vmul.f32 %v323, %v1366
          %v1373 = vrot.slane %v1367, 6
          %v1374 = vrot.slane %v1368, 6
          %v1375 = vsel %vm540, %v1373, %v1374
          %v1376 = vrot.slane %v1369, 6
          %v1377 = vsel %vm540, %v1374, %v1376
          %1378 = vrot.lane.b32.xlu0 %v1375, 125
          %v1379 = vpop.permute.xlu0 %1378
          %1380 = vrot.lane.b32.xlu0 %v1377, 125
          %v1381 = vpop.permute.xlu0 %1380
          %v1384 = vadd.f32 %v1342, %v1379
          %v1385 = vadd.f32 %v1343, %v1381
          %s1386 = sld [smem:[#allocation4 + $0x5e]]
          %v1387 = vstv %s1386
          %v1388 = vmul.f32 %v344, %v1387
          %v1389 = vmul.f32 %v340, %v1387
          %v1390 = vmul.f32 %v345, %v1387
          %v1394 = vrot.slane %v1388, 6
          %v1395 = vrot.slane %v1389, 6
          %v1396 = vsel %vm540, %v1394, %v1395
          %v1397 = vrot.slane %v1390, 6
          %v1398 = vsel %vm540, %v1395, %v1397
          %1399 = vrot.lane.b32.xlu0 %v1396, 125
          %v1400 = vpop.permute.xlu0 %1399
          %1401 = vrot.lane.b32.xlu0 %v1398, 125
          %v1402 = vpop.permute.xlu0 %1401
          %v1405 = vadd.f32 %v1363, %v1400
          %v1406 = vadd.f32 %v1364, %v1402
          %s1407 = sld [smem:[#allocation4 + $0x4]]
          %v1408 = vstv %s1407
          %v1409 = vmul.f32 %v322, %v1408
          %v1410 = vmul.f32 %v318, %v1408
          %1413 = vrot.lane.b32.xlu0 %v1409, 124
          %v1414 = vpop.permute.xlu0 %1413
          %1415 = vrot.lane.b32.xlu0 %v1410, 124
          %v1416 = vpop.permute.xlu0 %1415
          %v1419 = vadd.f32 %v1384, %v1414
          %v1420 = vadd.f32 %v1385, %v1416
          %s1421 = sld [smem:[#allocation4 + $0x35]]
          %v1422 = vstv %s1421
          %v1423 = vmul.f32 %v344, %v1422
          %v1424 = vmul.f32 %v340, %v1422
          %1427 = vrot.lane.b32.xlu0 %v1423, 124
          %v1428 = vpop.permute.xlu0 %1427
          %1429 = vrot.lane.b32.xlu0 %v1424, 124
          %v1430 = vpop.permute.xlu0 %1429
          %v1433 = vadd.f32 %v1405, %v1428
          %v1434 = vadd.f32 %v1406, %v1430
          %s1435 = sld [smem:[#allocation4 + $0xb]]
          %v1436 = vstv %s1435
          %v1437 = vmul.f32 %v322, %v1436
          %v1438 = vmul.f32 %v318, %v1436
          %v1439 = vmul.f32 %v323, %v1436
          %v1443 = vrot.slane %v1437, 1
          %v1444 = vrot.slane %v1438, 1
          %v1445 = vsel %vm366, %v1443, %v1444
          %v1446 = vrot.slane %v1439, 1
          %v1447 = vsel %vm366, %v1444, %v1446
          %1448 = vrot.lane.b32.xlu0 %v1445, 124
          %v1449 = vpop.permute.xlu0 %1448
          %1450 = vrot.lane.b32.xlu0 %v1447, 124
          %v1451 = vpop.permute.xlu0 %1450
          %v1454 = vadd.f32 %v1419, %v1449
          %v1455 = vadd.f32 %v1420, %v1451
          %s1456 = sld [smem:[#allocation4 + $0x3c]]
          %v1457 = vstv %s1456
          %v1458 = vmul.f32 %v344, %v1457
          %v1459 = vmul.f32 %v340, %v1457
          %v1460 = vmul.f32 %v345, %v1457
          %v1464 = vrot.slane %v1458, 1
          %v1465 = vrot.slane %v1459, 1
          %v1466 = vsel %vm366, %v1464, %v1465
          %v1467 = vrot.slane %v1460, 1
          %v1468 = vsel %vm366, %v1465, %v1467
          %1469 = vrot.lane.b32.xlu0 %v1466, 124
          %v1470 = vpop.permute.xlu0 %1469
          %1471 = vrot.lane.b32.xlu0 %v1468, 124
          %v1472 = vpop.permute.xlu0 %1471
          %v1475 = vadd.f32 %v1433, %v1470
          %v1476 = vadd.f32 %v1434, %v1472
          %s1477 = sld [smem:[#allocation4 + $0x12]]
          %v1478 = vstv %s1477
          %v1479 = vmul.f32 %v322, %v1478
          %v1480 = vmul.f32 %v318, %v1478
          %v1481 = vmul.f32 %v323, %v1478
          %v1485 = vrot.slane %v1479, 2
          %v1486 = vrot.slane %v1480, 2
          %v1487 = vsel %vm401, %v1485, %v1486
          %v1488 = vrot.slane %v1481, 2
          %v1489 = vsel %vm401, %v1486, %v1488
          %1490 = vrot.lane.b32.xlu0 %v1487, 124
          %v1491 = vpop.permute.xlu0 %1490
          %1492 = vrot.lane.b32.xlu0 %v1489, 124
          %v1493 = vpop.permute.xlu0 %1492
          %v1496 = vadd.f32 %v1454, %v1491
          %v1497 = vadd.f32 %v1455, %v1493
          %s1498 = sld [smem:[#allocation4 + $0x43]]
          %v1499 = vstv %s1498
          %v1500 = vmul.f32 %v344, %v1499
          %v1501 = vmul.f32 %v340, %v1499
          %v1502 = vmul.f32 %v345, %v1499
          %v1506 = vrot.slane %v1500, 2
          %v1507 = vrot.slane %v1501, 2
          %v1508 = vsel %vm401, %v1506, %v1507
          %v1509 = vrot.slane %v1502, 2
          %v1510 = vsel %vm401, %v1507, %v1509
          %1511 = vrot.lane.b32.xlu0 %v1508, 124
          %v1512 = vpop.permute.xlu0 %1511
          %1513 = vrot.lane.b32.xlu0 %v1510, 124
          %v1514 = vpop.permute.xlu0 %1513
          %v1517 = vadd.f32 %v1475, %v1512
          %v1518 = vadd.f32 %v1476, %v1514
          %s1519 = sld [smem:[#allocation4 + $0x19]]
          %v1520 = vstv %s1519
          %v1521 = vmul.f32 %v322, %v1520
          %v1522 = vmul.f32 %v318, %v1520
          %v1523 = vmul.f32 %v323, %v1520
          %v1527 = vrot.slane %v1521, 3
          %v1528 = vrot.slane %v1522, 3
          %v1529 = vsel %vm436, %v1527, %v1528
          %v1530 = vrot.slane %v1523, 3
          %v1531 = vsel %vm436, %v1528, %v1530
          %1532 = vrot.lane.b32.xlu0 %v1529, 124
          %v1533 = vpop.permute.xlu0 %1532
          %1534 = vrot.lane.b32.xlu0 %v1531, 124
          %v1535 = vpop.permute.xlu0 %1534
          %v1538 = vadd.f32 %v1496, %v1533
          %v1539 = vadd.f32 %v1497, %v1535
          %s1540 = sld [smem:[#allocation4 + $0x4a]]
          %v1541 = vstv %s1540
          %v1542 = vmul.f32 %v344, %v1541
          %v1543 = vmul.f32 %v340, %v1541
          %v1544 = vmul.f32 %v345, %v1541
          %v1548 = vrot.slane %v1542, 3
          %v1549 = vrot.slane %v1543, 3
          %v1550 = vsel %vm436, %v1548, %v1549
          %v1551 = vrot.slane %v1544, 3
          %v1552 = vsel %vm436, %v1549, %v1551
          %1553 = vrot.lane.b32.xlu0 %v1550, 124
          %v1554 = vpop.permute.xlu0 %1553
          %1555 = vrot.lane.b32.xlu0 %v1552, 124
          %v1556 = vpop.permute.xlu0 %1555
          %v1559 = vadd.f32 %v1517, %v1554
          %v1560 = vadd.f32 %v1518, %v1556
          %s1561 = sld [smem:[#allocation4 + $0x20]]
          %v1562 = vstv %s1561
          %v1563 = vmul.f32 %v322, %v1562
          %v1564 = vmul.f32 %v318, %v1562
          %v1565 = vmul.f32 %v323, %v1562
          %v1569 = vrot.slane %v1563, 4
          %v1570 = vrot.slane %v1564, 4
          %v1571 = vsel %vm471, %v1569, %v1570
          %v1572 = vrot.slane %v1565, 4
          %v1573 = vsel %vm471, %v1570, %v1572
          %1574 = vrot.lane.b32.xlu0 %v1571, 124
          %v1575 = vpop.permute.xlu0 %1574
          %1576 = vrot.lane.b32.xlu0 %v1573, 124
          %v1577 = vpop.permute.xlu0 %1576
          %v1580 = vadd.f32 %v1538, %v1575
          %v1581 = vadd.f32 %v1539, %v1577
          %s1582 = sld [smem:[#allocation4 + $0x51]]
          %v1583 = vstv %s1582
          %v1584 = vmul.f32 %v344, %v1583
          %v1585 = vmul.f32 %v340, %v1583
          %v1586 = vmul.f32 %v345, %v1583
          %v1590 = vrot.slane %v1584, 4
          %v1591 = vrot.slane %v1585, 4
          %v1592 = vsel %vm471, %v1590, %v1591
          %v1593 = vrot.slane %v1586, 4
          %v1594 = vsel %vm471, %v1591, %v1593
          %1595 = vrot.lane.b32.xlu0 %v1592, 124
          %v1596 = vpop.permute.xlu0 %1595
          %1597 = vrot.lane.b32.xlu0 %v1594, 124
          %v1598 = vpop.permute.xlu0 %1597
          %v1601 = vadd.f32 %v1559, %v1596
          %v1602 = vadd.f32 %v1560, %v1598
          %s1603 = sld [smem:[#allocation4 + $0x27]]
          %v1604 = vstv %s1603
          %v1605 = vmul.f32 %v322, %v1604
          %v1606 = vmul.f32 %v318, %v1604
          %v1607 = vmul.f32 %v323, %v1604
          %v1611 = vrot.slane %v1605, 5
          %v1612 = vrot.slane %v1606, 5
          %v1613 = vsel %vm315, %v1611, %v1612
          %v1614 = vrot.slane %v1607, 5
          %v1615 = vsel %vm315, %v1612, %v1614
          %1616 = vrot.lane.b32.xlu0 %v1613, 124
          %v1617 = vpop.permute.xlu0 %1616
          %1618 = vrot.lane.b32.xlu0 %v1615, 124
          %v1619 = vpop.permute.xlu0 %1618
          %v1622 = vadd.f32 %v1580, %v1617
          %v1623 = vadd.f32 %v1581, %v1619
          %s1624 = sld [smem:[#allocation4 + $0x58]]
          %v1625 = vstv %s1624
          %v1626 = vmul.f32 %v344, %v1625
          %v1627 = vmul.f32 %v340, %v1625
          %v1628 = vmul.f32 %v345, %v1625
          %v1632 = vrot.slane %v1626, 5
          %v1633 = vrot.slane %v1627, 5
          %v1634 = vsel %vm315, %v1632, %v1633
          %v1635 = vrot.slane %v1628, 5
          %v1636 = vsel %vm315, %v1633, %v1635
          %1637 = vrot.lane.b32.xlu0 %v1634, 124
          %v1638 = vpop.permute.xlu0 %1637
          %1639 = vrot.lane.b32.xlu0 %v1636, 124
          %v1640 = vpop.permute.xlu0 %1639
          %v1643 = vadd.f32 %v1601, %v1638
          %v1644 = vadd.f32 %v1602, %v1640
          %s1645 = sld [smem:[#allocation4 + $0x2e]]
          %v1646 = vstv %s1645
          %v1647 = vmul.f32 %v322, %v1646
          %v1648 = vmul.f32 %v318, %v1646
          %v1649 = vmul.f32 %v323, %v1646
          %v1653 = vrot.slane %v1647, 6
          %v1654 = vrot.slane %v1648, 6
          %v1655 = vsel %vm540, %v1653, %v1654
          %v1656 = vrot.slane %v1649, 6
          %v1657 = vsel %vm540, %v1654, %v1656
          %1658 = vrot.lane.b32.xlu0 %v1655, 124
          %v1659 = vpop.permute.xlu0 %1658
          %1660 = vrot.lane.b32.xlu0 %v1657, 124
          %v1661 = vpop.permute.xlu0 %1660
          %v1664 = vadd.f32 %v1622, %v1659
          %v1665 = vadd.f32 %v1623, %v1661
          %s1666 = sld [smem:[#allocation4 + $0x5f]]
          %v1667 = vstv %s1666
          %v1668 = vmul.f32 %v344, %v1667
          %v1669 = vmul.f32 %v340, %v1667
          %v1670 = vmul.f32 %v345, %v1667
          %v1674 = vrot.slane %v1668, 6
          %v1675 = vrot.slane %v1669, 6
          %v1676 = vsel %vm540, %v1674, %v1675
          %v1677 = vrot.slane %v1670, 6
          %v1678 = vsel %vm540, %v1675, %v1677
          %1679 = vrot.lane.b32.xlu0 %v1676, 124
          %v1680 = vpop.permute.xlu0 %1679
          %1681 = vrot.lane.b32.xlu0 %v1678, 124
          %v1682 = vpop.permute.xlu0 %1681
          %v1685 = vadd.f32 %v1643, %v1680
          %v1686 = vadd.f32 %v1644, %v1682
          %s1687 = sld [smem:[#allocation4 + $0x5]]
          %v1688 = vstv %s1687
          %v1689 = vmul.f32 %v322, %v1688
          %v1690 = vmul.f32 %v318, %v1688
          %1693 = vrot.lane.b32.xlu0 %v1689, 123
          %v1694 = vpop.permute.xlu0 %1693
          %1695 = vrot.lane.b32.xlu0 %v1690, 123
          %v1696 = vpop.permute.xlu0 %1695
          %v1699 = vadd.f32 %v1664, %v1694
          %v1700 = vadd.f32 %v1665, %v1696
          %s1701 = sld [smem:[#allocation4 + $0x36]]
          %v1702 = vstv %s1701
          %v1703 = vmul.f32 %v344, %v1702
          %v1704 = vmul.f32 %v340, %v1702
          %1707 = vrot.lane.b32.xlu0 %v1703, 123
          %v1708 = vpop.permute.xlu0 %1707
          %1709 = vrot.lane.b32.xlu0 %v1704, 123
          %v1710 = vpop.permute.xlu0 %1709
          %v1713 = vadd.f32 %v1685, %v1708
          %v1714 = vadd.f32 %v1686, %v1710
          %s1715 = sld [smem:[#allocation4 + $0xc]]
          %v1716 = vstv %s1715
          %v1717 = vmul.f32 %v322, %v1716
          %v1718 = vmul.f32 %v318, %v1716
          %v1719 = vmul.f32 %v323, %v1716
          %v1723 = vrot.slane %v1717, 1
          %v1724 = vrot.slane %v1718, 1
          %v1725 = vsel %vm366, %v1723, %v1724
          %v1726 = vrot.slane %v1719, 1
          %v1727 = vsel %vm366, %v1724, %v1726
          %1728 = vrot.lane.b32.xlu0 %v1725, 123
          %v1729 = vpop.permute.xlu0 %1728
          %1730 = vrot.lane.b32.xlu0 %v1727, 123
          %v1731 = vpop.permute.xlu0 %1730
          %v1734 = vadd.f32 %v1699, %v1729
          %v1735 = vadd.f32 %v1700, %v1731
          %s1736 = sld [smem:[#allocation4 + $0x3d]]
          %v1737 = vstv %s1736
          %v1738 = vmul.f32 %v344, %v1737
          %v1739 = vmul.f32 %v340, %v1737
          %v1740 = vmul.f32 %v345, %v1737
          %v1744 = vrot.slane %v1738, 1
          %v1745 = vrot.slane %v1739, 1
          %v1746 = vsel %vm366, %v1744, %v1745
          %v1747 = vrot.slane %v1740, 1
          %v1748 = vsel %vm366, %v1745, %v1747
          %1749 = vrot.lane.b32.xlu0 %v1746, 123
          %v1750 = vpop.permute.xlu0 %1749
          %1751 = vrot.lane.b32.xlu0 %v1748, 123
          %v1752 = vpop.permute.xlu0 %1751
          %v1755 = vadd.f32 %v1713, %v1750
          %v1756 = vadd.f32 %v1714, %v1752
          %s1757 = sld [smem:[#allocation4 + $0x13]]
          %v1758 = vstv %s1757
          %v1759 = vmul.f32 %v322, %v1758
          %v1760 = vmul.f32 %v318, %v1758
          %v1761 = vmul.f32 %v323, %v1758
          %v1765 = vrot.slane %v1759, 2
          %v1766 = vrot.slane %v1760, 2
          %v1767 = vsel %vm401, %v1765, %v1766
          %v1768 = vrot.slane %v1761, 2
          %v1769 = vsel %vm401, %v1766, %v1768
          %1770 = vrot.lane.b32.xlu0 %v1767, 123
          %v1771 = vpop.permute.xlu0 %1770
          %1772 = vrot.lane.b32.xlu0 %v1769, 123
          %v1773 = vpop.permute.xlu0 %1772
          %v1776 = vadd.f32 %v1734, %v1771
          %v1777 = vadd.f32 %v1735, %v1773
          %s1778 = sld [smem:[#allocation4 + $0x44]]
          %v1779 = vstv %s1778
          %v1780 = vmul.f32 %v344, %v1779
          %v1781 = vmul.f32 %v340, %v1779
          %v1782 = vmul.f32 %v345, %v1779
          %v1786 = vrot.slane %v1780, 2
          %v1787 = vrot.slane %v1781, 2
          %v1788 = vsel %vm401, %v1786, %v1787
          %v1789 = vrot.slane %v1782, 2
          %v1790 = vsel %vm401, %v1787, %v1789
          %1791 = vrot.lane.b32.xlu0 %v1788, 123
          %v1792 = vpop.permute.xlu0 %1791
          %1793 = vrot.lane.b32.xlu0 %v1790, 123
          %v1794 = vpop.permute.xlu0 %1793
          %v1797 = vadd.f32 %v1755, %v1792
          %v1798 = vadd.f32 %v1756, %v1794
          %s1799 = sld [smem:[#allocation4 + $0x1a]]
          %v1800 = vstv %s1799
          %v1801 = vmul.f32 %v322, %v1800
          %v1802 = vmul.f32 %v318, %v1800
          %v1803 = vmul.f32 %v323, %v1800
          %v1807 = vrot.slane %v1801, 3
          %v1808 = vrot.slane %v1802, 3
          %v1809 = vsel %vm436, %v1807, %v1808
          %v1810 = vrot.slane %v1803, 3
          %v1811 = vsel %vm436, %v1808, %v1810
          %1812 = vrot.lane.b32.xlu0 %v1809, 123
          %v1813 = vpop.permute.xlu0 %1812
          %1814 = vrot.lane.b32.xlu0 %v1811, 123
          %v1815 = vpop.permute.xlu0 %1814
          %v1818 = vadd.f32 %v1776, %v1813
          %v1819 = vadd.f32 %v1777, %v1815
          %s1820 = sld [smem:[#allocation4 + $0x4b]]
          %v1821 = vstv %s1820
          %v1822 = vmul.f32 %v344, %v1821
          %v1823 = vmul.f32 %v340, %v1821
          %v1824 = vmul.f32 %v345, %v1821
          %v1828 = vrot.slane %v1822, 3
          %v1829 = vrot.slane %v1823, 3
          %v1830 = vsel %vm436, %v1828, %v1829
          %v1831 = vrot.slane %v1824, 3
          %v1832 = vsel %vm436, %v1829, %v1831
          %1833 = vrot.lane.b32.xlu0 %v1830, 123
          %v1834 = vpop.permute.xlu0 %1833
          %1835 = vrot.lane.b32.xlu0 %v1832, 123
          %v1836 = vpop.permute.xlu0 %1835
          %v1839 = vadd.f32 %v1797, %v1834
          %v1840 = vadd.f32 %v1798, %v1836
          %s1841 = sld [smem:[#allocation4 + $0x21]]
          %v1842 = vstv %s1841
          %v1843 = vmul.f32 %v322, %v1842
          %v1844 = vmul.f32 %v318, %v1842
          %v1845 = vmul.f32 %v323, %v1842
          %v1849 = vrot.slane %v1843, 4
          %v1850 = vrot.slane %v1844, 4
          %v1851 = vsel %vm471, %v1849, %v1850
          %v1852 = vrot.slane %v1845, 4
          %v1853 = vsel %vm471, %v1850, %v1852
          %1854 = vrot.lane.b32.xlu0 %v1851, 123
          %v1855 = vpop.permute.xlu0 %1854
          %1856 = vrot.lane.b32.xlu0 %v1853, 123
          %v1857 = vpop.permute.xlu0 %1856
          %v1860 = vadd.f32 %v1818, %v1855
          %v1861 = vadd.f32 %v1819, %v1857
          %s1862 = sld [smem:[#allocation4 + $0x52]]
          %v1863 = vstv %s1862
          %v1864 = vmul.f32 %v344, %v1863
          %v1865 = vmul.f32 %v340, %v1863
          %v1866 = vmul.f32 %v345, %v1863
          %v1870 = vrot.slane %v1864, 4
          %v1871 = vrot.slane %v1865, 4
          %v1872 = vsel %vm471, %v1870, %v1871
          %v1873 = vrot.slane %v1866, 4
          %v1874 = vsel %vm471, %v1871, %v1873
          %1875 = vrot.lane.b32.xlu0 %v1872, 123
          %v1876 = vpop.permute.xlu0 %1875
          %1877 = vrot.lane.b32.xlu0 %v1874, 123
          %v1878 = vpop.permute.xlu0 %1877
          %v1881 = vadd.f32 %v1839, %v1876
          %v1882 = vadd.f32 %v1840, %v1878
          %s1883 = sld [smem:[#allocation4 + $0x28]]
          %v1884 = vstv %s1883
          %v1885 = vmul.f32 %v322, %v1884
          %v1886 = vmul.f32 %v318, %v1884
          %v1887 = vmul.f32 %v323, %v1884
          %v1891 = vrot.slane %v1885, 5
          %v1892 = vrot.slane %v1886, 5
          %v1893 = vsel %vm315, %v1891, %v1892
          %v1894 = vrot.slane %v1887, 5
          %v1895 = vsel %vm315, %v1892, %v1894
          %1896 = vrot.lane.b32.xlu0 %v1893, 123
          %v1897 = vpop.permute.xlu0 %1896
          %1898 = vrot.lane.b32.xlu0 %v1895, 123
          %v1899 = vpop.permute.xlu0 %1898
          %v1902 = vadd.f32 %v1860, %v1897
          %v1903 = vadd.f32 %v1861, %v1899
          %s1904 = sld [smem:[#allocation4 + $0x59]]
          %v1905 = vstv %s1904
          %v1906 = vmul.f32 %v344, %v1905
          %v1907 = vmul.f32 %v340, %v1905
          %v1908 = vmul.f32 %v345, %v1905
          %v1912 = vrot.slane %v1906, 5
          %v1913 = vrot.slane %v1907, 5
          %v1914 = vsel %vm315, %v1912, %v1913
          %v1915 = vrot.slane %v1908, 5
          %v1916 = vsel %vm315, %v1913, %v1915
          %1917 = vrot.lane.b32.xlu0 %v1914, 123
          %v1918 = vpop.permute.xlu0 %1917
          %1919 = vrot.lane.b32.xlu0 %v1916, 123
          %v1920 = vpop.permute.xlu0 %1919
          %v1923 = vadd.f32 %v1881, %v1918
          %v1924 = vadd.f32 %v1882, %v1920
          %s1925 = sld [smem:[#allocation4 + $0x2f]]
          %v1926 = vstv %s1925
          %v1927 = vmul.f32 %v322, %v1926
          %v1928 = vmul.f32 %v318, %v1926
          %v1929 = vmul.f32 %v323, %v1926
          %v1933 = vrot.slane %v1927, 6
          %v1934 = vrot.slane %v1928, 6
          %v1935 = vsel %vm540, %v1933, %v1934
          %v1936 = vrot.slane %v1929, 6
          %v1937 = vsel %vm540, %v1934, %v1936
          %1938 = vrot.lane.b32.xlu0 %v1935, 123
          %v1939 = vpop.permute.xlu0 %1938
          %1940 = vrot.lane.b32.xlu0 %v1937, 123
          %v1941 = vpop.permute.xlu0 %1940
          %v1944 = vadd.f32 %v1902, %v1939
          %v1945 = vadd.f32 %v1903, %v1941
          %s1946 = sld [smem:[#allocation4 + $0x60]]
          %v1947 = vstv %s1946
          %v1948 = vmul.f32 %v344, %v1947
          %v1949 = vmul.f32 %v340, %v1947
          %v1950 = vmul.f32 %v345, %v1947
          %v1954 = vrot.slane %v1948, 6
          %v1955 = vrot.slane %v1949, 6
          %v1956 = vsel %vm540, %v1954, %v1955
          %v1957 = vrot.slane %v1950, 6
          %v1958 = vsel %vm540, %v1955, %v1957
          %1959 = vrot.lane.b32.xlu0 %v1956, 123
          %v1960 = vpop.permute.xlu0 %1959
          %1961 = vrot.lane.b32.xlu0 %v1958, 123
          %v1962 = vpop.permute.xlu0 %1961
          %v1965 = vadd.f32 %v1923, %v1960
          %v1966 = vadd.f32 %v1924, %v1962
          %s1967 = sld [smem:[#allocation4 + $0x6]]
          %v1968 = vstv %s1967
          %v1969 = vmul.f32 %v322, %v1968
          %v1970 = vmul.f32 %v318, %v1968
          %1973 = vrot.lane.b32.xlu0 %v1969, 122
          %v1974 = vpop.permute.xlu0 %1973
          %1975 = vrot.lane.b32.xlu0 %v1970, 122
          %v1976 = vpop.permute.xlu0 %1975
          %v1979 = vadd.f32 %v1944, %v1974
          %v1980 = vadd.f32 %v1945, %v1976
          %s1981 = sld [smem:[#allocation4 + $0x37]]
          %v1982 = vstv %s1981
          %v1983 = vmul.f32 %v344, %v1982
          %v1984 = vmul.f32 %v340, %v1982
          %1987 = vrot.lane.b32.xlu0 %v1983, 122
          %v1988 = vpop.permute.xlu0 %1987
          %1989 = vrot.lane.b32.xlu0 %v1984, 122
          %v1990 = vpop.permute.xlu0 %1989
          %v1993 = vadd.f32 %v1965, %v1988
          %v1994 = vadd.f32 %v1966, %v1990
          %s1995 = sld [smem:[#allocation4 + $0xd]]
          %v1996 = vstv %s1995
          %v1997 = vmul.f32 %v322, %v1996
          %v1998 = vmul.f32 %v318, %v1996
          %v1999 = vmul.f32 %v323, %v1996
          %v2003 = vrot.slane %v1997, 1
          %v2004 = vrot.slane %v1998, 1
          %v2005 = vsel %vm366, %v2003, %v2004
          %v2006 = vrot.slane %v1999, 1
          %v2007 = vsel %vm366, %v2004, %v2006
          %2008 = vrot.lane.b32.xlu0 %v2005, 122
          %v2009 = vpop.permute.xlu0 %2008
          %2010 = vrot.lane.b32.xlu0 %v2007, 122
          %v2011 = vpop.permute.xlu0 %2010
          %v2014 = vadd.f32 %v1979, %v2009
          %v2015 = vadd.f32 %v1980, %v2011
          %s2016 = sld [smem:[#allocation4 + $0x3e]]
          %v2017 = vstv %s2016
          %v2018 = vmul.f32 %v344, %v2017
          %v2019 = vmul.f32 %v340, %v2017
          %v2020 = vmul.f32 %v345, %v2017
          %v2024 = vrot.slane %v2018, 1
          %v2025 = vrot.slane %v2019, 1
          %v2026 = vsel %vm366, %v2024, %v2025
          %v2027 = vrot.slane %v2020, 1
          %v2028 = vsel %vm366, %v2025, %v2027
          %2029 = vrot.lane.b32.xlu0 %v2026, 122
          %v2030 = vpop.permute.xlu0 %2029
          %2031 = vrot.lane.b32.xlu0 %v2028, 122
          %v2032 = vpop.permute.xlu0 %2031
          %v2035 = vadd.f32 %v1993, %v2030
          %v2036 = vadd.f32 %v1994, %v2032
          %s2037 = sld [smem:[#allocation4 + $0x14]]
          %v2038 = vstv %s2037
          %v2039 = vmul.f32 %v322, %v2038
          %v2040 = vmul.f32 %v318, %v2038
          %v2041 = vmul.f32 %v323, %v2038
          %v2045 = vrot.slane %v2039, 2
          %v2046 = vrot.slane %v2040, 2
          %v2047 = vsel %vm401, %v2045, %v2046
          %v2048 = vrot.slane %v2041, 2
          %v2049 = vsel %vm401, %v2046, %v2048
          %2050 = vrot.lane.b32.xlu0 %v2047, 122
          %v2051 = vpop.permute.xlu0 %2050
          %2052 = vrot.lane.b32.xlu0 %v2049, 122
          %v2053 = vpop.permute.xlu0 %2052
          %v2056 = vadd.f32 %v2014, %v2051
          %v2057 = vadd.f32 %v2015, %v2053
          %s2058 = sld [smem:[#allocation4 + $0x45]]
          %v2059 = vstv %s2058
          %v2060 = vmul.f32 %v344, %v2059
          %v2061 = vmul.f32 %v340, %v2059
          %v2062 = vmul.f32 %v345, %v2059
          %v2066 = vrot.slane %v2060, 2
          %v2067 = vrot.slane %v2061, 2
          %v2068 = vsel %vm401, %v2066, %v2067
          %v2069 = vrot.slane %v2062, 2
          %v2070 = vsel %vm401, %v2067, %v2069
          %2071 = vrot.lane.b32.xlu0 %v2068, 122
          %v2072 = vpop.permute.xlu0 %2071
          %2073 = vrot.lane.b32.xlu0 %v2070, 122
          %v2074 = vpop.permute.xlu0 %2073
          %v2077 = vadd.f32 %v2035, %v2072
          %v2078 = vadd.f32 %v2036, %v2074
          %s2079 = sld [smem:[#allocation4 + $0x1b]]
          %v2080 = vstv %s2079
          %v2081 = vmul.f32 %v322, %v2080
          %v2082 = vmul.f32 %v318, %v2080
          %v2083 = vmul.f32 %v323, %v2080
          %v2087 = vrot.slane %v2081, 3
          %v2088 = vrot.slane %v2082, 3
          %v2089 = vsel %vm436, %v2087, %v2088
          %v2090 = vrot.slane %v2083, 3
          %v2091 = vsel %vm436, %v2088, %v2090
          %2092 = vrot.lane.b32.xlu0 %v2089, 122
          %v2093 = vpop.permute.xlu0 %2092
          %2094 = vrot.lane.b32.xlu0 %v2091, 122
          %v2095 = vpop.permute.xlu0 %2094
          %v2098 = vadd.f32 %v2056, %v2093
          %v2099 = vadd.f32 %v2057, %v2095
          %s2100 = sld [smem:[#allocation4 + $0x4c]]
          %v2101 = vstv %s2100
          %v2102 = vmul.f32 %v344, %v2101
          %v2103 = vmul.f32 %v340, %v2101
          %v2104 = vmul.f32 %v345, %v2101
          %v2108 = vrot.slane %v2102, 3
          %v2109 = vrot.slane %v2103, 3
          %v2110 = vsel %vm436, %v2108, %v2109
          %v2111 = vrot.slane %v2104, 3
          %v2112 = vsel %vm436, %v2109, %v2111
          %2113 = vrot.lane.b32.xlu0 %v2110, 122
          %v2114 = vpop.permute.xlu0 %2113
          %2115 = vrot.lane.b32.xlu0 %v2112, 122
          %v2116 = vpop.permute.xlu0 %2115
          %v2119 = vadd.f32 %v2077, %v2114
          %v2120 = vadd.f32 %v2078, %v2116
          %s2121 = sld [smem:[#allocation4 + $0x22]]
          %v2122 = vstv %s2121
          %v2123 = vmul.f32 %v322, %v2122
          %v2124 = vmul.f32 %v318, %v2122
          %v2125 = vmul.f32 %v323, %v2122
          %v2129 = vrot.slane %v2123, 4
          %v2130 = vrot.slane %v2124, 4
          %v2131 = vsel %vm471, %v2129, %v2130
          %v2132 = vrot.slane %v2125, 4
          %v2133 = vsel %vm471, %v2130, %v2132
          %2134 = vrot.lane.b32.xlu0 %v2131, 122
          %v2135 = vpop.permute.xlu0 %2134
          %2136 = vrot.lane.b32.xlu0 %v2133, 122
          %v2137 = vpop.permute.xlu0 %2136
          %v2140 = vadd.f32 %v2098, %v2135
          %v2141 = vadd.f32 %v2099, %v2137
          %s2142 = sld [smem:[#allocation4 + $0x53]]
          %v2143 = vstv %s2142
          %v2144 = vmul.f32 %v344, %v2143
          %v2145 = vmul.f32 %v340, %v2143
          %v2146 = vmul.f32 %v345, %v2143
          %v2150 = vrot.slane %v2144, 4
          %v2151 = vrot.slane %v2145, 4
          %v2152 = vsel %vm471, %v2150, %v2151
          %v2153 = vrot.slane %v2146, 4
          %v2154 = vsel %vm471, %v2151, %v2153
          %2155 = vrot.lane.b32.xlu0 %v2152, 122
          %v2156 = vpop.permute.xlu0 %2155
          %2157 = vrot.lane.b32.xlu0 %v2154, 122
          %v2158 = vpop.permute.xlu0 %2157
          %v2161 = vadd.f32 %v2119, %v2156
          %v2162 = vadd.f32 %v2120, %v2158
          %s2163 = sld [smem:[#allocation4 + $0x29]]
          %v2164 = vstv %s2163
          %v2165 = vmul.f32 %v322, %v2164
          %v2166 = vmul.f32 %v318, %v2164
          %v2167 = vmul.f32 %v323, %v2164
          %v2171 = vrot.slane %v2165, 5
          %v2172 = vrot.slane %v2166, 5
          %v2173 = vsel %vm315, %v2171, %v2172
          %v2174 = vrot.slane %v2167, 5
          %v2175 = vsel %vm315, %v2172, %v2174
          %2176 = vrot.lane.b32.xlu0 %v2173, 122
          %v2177 = vpop.permute.xlu0 %2176
          %2178 = vrot.lane.b32.xlu0 %v2175, 122
          %v2179 = vpop.permute.xlu0 %2178
          %v2182 = vadd.f32 %v2140, %v2177
          %v2183 = vadd.f32 %v2141, %v2179
          %s2184 = sld [smem:[#allocation4 + $0x5a]]
          %v2185 = vstv %s2184
          %v2186 = vmul.f32 %v344, %v2185
          %v2187 = vmul.f32 %v340, %v2185
          %v2188 = vmul.f32 %v345, %v2185
          %v2192 = vrot.slane %v2186, 5
          %v2193 = vrot.slane %v2187, 5
          %v2194 = vsel %vm315, %v2192, %v2193
          %v2195 = vrot.slane %v2188, 5
          %v2196 = vsel %vm315, %v2193, %v2195
          %2197 = vrot.lane.b32.xlu0 %v2194, 122
          %v2198 = vpop.permute.xlu0 %2197
          %2199 = vrot.lane.b32.xlu0 %v2196, 122
          %v2200 = vpop.permute.xlu0 %2199
          %v2203 = vadd.f32 %v2161, %v2198
          %v2204 = vadd.f32 %v2162, %v2200
          %s2205 = sld [smem:[#allocation4 + $0x30]]
          %v2206 = vstv %s2205
          %v2207 = vmul.f32 %v322, %v2206
          %v2208 = vmul.f32 %v318, %v2206
          %v2209 = vmul.f32 %v323, %v2206
          %v2213 = vrot.slane %v2207, 6
          %v2214 = vrot.slane %v2208, 6
          %v2215 = vsel %vm540, %v2213, %v2214
          %v2216 = vrot.slane %v2209, 6
          %v2217 = vsel %vm540, %v2214, %v2216
          %2218 = vrot.lane.b32.xlu0 %v2215, 122
          %v2219 = vpop.permute.xlu0 %2218
          %2220 = vrot.lane.b32.xlu0 %v2217, 122
          %v2221 = vpop.permute.xlu0 %2220
          %v2224 = vadd.f32 %v2182, %v2219
          %v2225 = vadd.f32 %v2183, %v2221
          %s2226 = sld [smem:[#allocation4 + $0x61]]
          %v2227 = vstv %s2226
          %v2228 = vmul.f32 %v344, %v2227
          %v2229 = vmul.f32 %v340, %v2227
          %v2230 = vmul.f32 %v345, %v2227
          %v2234 = vrot.slane %v2228, 6
          %v2235 = vrot.slane %v2229, 6
          %v2236 = vsel %vm540, %v2234, %v2235
          %v2237 = vrot.slane %v2230, 6
          %v2238 = vsel %vm540, %v2235, %v2237
          %2239 = vrot.lane.b32.xlu0 %v2236, 122
          %v2240 = vpop.permute.xlu0 %2239
          %2241 = vrot.lane.b32.xlu0 %v2238, 122
          %v2242 = vpop.permute.xlu0 %2241
          %v2245 = vadd.f32 %v2203, %v2240
          %v2246 = vadd.f32 %v2204, %v2242
          %v2247 = vadd.f32 %v2224, %v2245
          %v2248 = vadd.f32 %v2225, %v2246
          %s2249 = sld [smem:[#allocation9]]
          %v2250 = vstv %s2249
          %v2251 = vmul.f32 %v2247, %v2250
          %v2252 = vmul.f32 %v2248, %v2250
          %s2253 = sld [smem:[#allocation9 + $0x1]]
          %v2254 = vstv %s2253
          %v2255 = vadd.f32 %v2251, %v2254
          %v2256 = vadd.f32 %v2252, %v2254
          %v2257 = vxor.u32 %v2255, 2147483648
          %v2258 = vxor.u32 %v2256, 2147483648
          %v2259 = vmul.f32 %v2257, 1.442695
          %v2260 = vpow.pop %v2259
          %v2261 = vmul.f32 %v2258, 1.442695
          %v2262 = vpow.pop %v2261
          %v2263 = vadd.f32 %v2260, 1.0
          %v2264 = vadd.f32 %v2262, 1.0
          %v2265 = vrcp.pop %v2263
          %v2266 = vmul.f32 1.0, %v2265
          %v2267 = vrcp.pop %v2264
          %v2268 = vmul.f32 1.0, %v2267
          %2269 = vst.msk [vmem:[%s230] sm:$0xff] %vm251, %v2266
          %2270 = vst.msk [vmem:[%s230 + $0x8] sm:$0xff] %vm251, %v2268
        $region52: #{tpu_custom_call.1} parent=31 // pred_fallthru
          _
        %s2271 = sand.u32 %s112, 1
        %s2272 = scalar_lea.sflag [#allocation6], %s2271
        %s2273 = sand.u32 %s112, 1
        %s2274 = smul.addr %s2273, 16
        %s2275 = scalar_lea.vmem [#allocation11], %s2274
        // Predicated region
        $region53: #{tpu_custom_call.1} parent=31 // pred_check
          %p2276 = pneg %p122
        $region54: #{tpu_custom_call.1} parent=31 // pred_check_branch
          %2278 = sbr.rel (%p2276) target = $region56
        $region55: #{tpu_custom_call.1} parent=31 // pred_region
          %s2280 = ssub.s32 256, 256
          %2281 = vsyncadd %s2272, %s2280
          %s2282 = smul.addr %s26, 2
          %s2283 = smul.addr %s2282, 128
          %s2284 = scalar_lea.hbm %s3, %s2283
          %s2285 = sshll.u32 %s2275, 4
          %s2286 = int_to_ptr.vmem [resolvable:$true] %s2285
          %2291 = dma.vmem_to_hbm [thread:$0]  %s2286, 256, %s2284, %s2272, 128, 128, 8
        $region56: #{tpu_custom_call.1} parent=31 // pred_fallthru
          _
      $region32: #{tpu_custom_call.1} parent=5 // pred_fallthru
        _
      %p2292 = scmp.le.s32.totalorder 2, %s17
      // Predicated region
      $region57: #{tpu_custom_call.1} parent=5 // pred_check
        %p2293 = pneg %p2292
      $region58: #{tpu_custom_call.1} parent=5 // pred_check_branch
        %2295 = sbr.rel (%p2293) target = $region60
      $region59: #{tpu_custom_call.1} parent=5 // pred_region
        %s2296 = ssub.s32 %s17, 2
        // Predicated region
        $region61: #{tpu_custom_call.1} parent=59 // pred_check
          %p2297 = pneg %p128
        $region62: #{tpu_custom_call.1} parent=59 // pred_check_branch
          %2299 = sbr.rel (%p2297) target = $region64
        $region63: #{tpu_custom_call.1} parent=59 // pred_region
          %s2300 = sand.u32 %s113, 1
          %s2301 = scalar_lea.sflag [#allocation6], %s2300
          %s2302 = sand.u32 %s113, 1
          %s2303 = smul.addr %s2302, 16
          %s2304 = scalar_lea.vmem [#allocation11], %s2303
          %2305 = dma.done %s2301, 256
        $region64: #{tpu_custom_call.1} parent=59 // pred_fallthru
          _
      $region60: #{tpu_custom_call.1} parent=5 // pred_fallthru
        _
    $region6: #{tpu_custom_call.1} parent=1 // loop_footer
      %s21 = sadd.s32 1, %s17
    $region7: #{tpu_custom_call.1} parent=1 // loop_footer_branch
      %16 = sbr.rel target = $region3
    $region8: #{tpu_custom_call.1} parent=1 // loop_exit
      _
    %2306 = vsyncpa [#allocation5], 1
    %s2307 = scalar_lea.sflag [#allocation5], 1
    %2308 = vsyncpa %s2307, 1
    %2309 = vsyncpa [#allocation6], 1
    %s2310 = scalar_lea.sflag [#allocation6], 1
    %2311 = vsyncpa %s2310, 1
    %2312 = vsyncpa [#allocation7], 1
    %s2313 = scalar_lea.sflag [#allocation7], 1
    %2314 = vsyncpa %s2313, 1
    %2315 = vsyncpa [#allocation8], 1
    %s2316 = scalar_lea.sflag [#allocation8], 1
    %2317 = vsyncpa %s2316, 1

</llo_original>
